<compile_context>
chip_gen: v7x
topology: tpu7x:2x2x1
jax: 0.10.0
libtpu: 0.0.40
codegen_flags: <defaults>
</compile_context>

<pallas_src>
import numpy as np
import jax
import jax.numpy as jnp
from jax.experimental import pallas as pl
from jax.experimental.pallas import tpu as pltpu

EOS_TOKEN_ID = 2          # facebook/bart-large-cnn eos token id
INPUT_DIM = 1024
INNER_DIM = 512
NUM_CLASSES = 9
OUT_COLS = 2 * NUM_CLASSES          # [0:9]=classifier, [9:18]=counter
WEIGHT_DTYPE = jnp.bfloat16


def meta_head_kernel(last_pos_ref, hidden_hbm_ref, w1_hbm_ref, b1_ref,
                     w2_hbm_ref, b2_ref, out_ref,
                     w1_vmem, w2_vmem, rep_ref, row_sem, w_sem):
    """EOS-row gather + manual weight DMA (all overlapped) + fused heads.

    last_pos_ref  : (B,) int32 in SMEM   -- index of the last <eos> per example
    hidden_hbm_ref: (B, S, H) f32, left in HBM (memory_space=pl.ANY)
    w1_hbm_ref    : (H, 2*INNER) bf16 in HBM  -- both heads' dense layers, concat
    b1_ref        : (1, 2*INNER) bf16 (auto-copied to VMEM, tiny)
    w2_hbm_ref    : (2*INNER, 2*NUM_CLASSES) bf16 in HBM -- block-diag out_proj
    b2_ref        : (1, 2*NUM_CLASSES) bf16 (auto-copied to VMEM, tiny)
    out_ref       : (B_pad, 2*NUM_CLASSES) f32
    w1_vmem/w2_vmem: bf16 VMEM scratch for the manual weight copies
    rep_ref       : (B_pad, H) f32 VMEM scratch (gathered sentence representations)
    row_sem       : (B,) DMA semaphores (per-row gather)
    w_sem         : (2,) DMA semaphores (weights)
    """
    B = last_pos_ref.shape[0]
    B_pad, H = rep_ref.shape

    # Kick off the big weight copies first so every later DMA hides under them.
    w1_cp = pltpu.make_async_copy(w1_hbm_ref, w1_vmem, w_sem.at[0])
    w2_cp = pltpu.make_async_copy(w2_hbm_ref, w2_vmem, w_sem.at[1])
    w1_cp.start()
    w2_cp.start()

    # Zero the sublane-padding rows (disjoint from the DMA destinations).
    if B_pad > B:
        rep_ref[pl.ds(B, B_pad - B), :] = jnp.zeros((B_pad - B, H), jnp.float32)

    # Gather: DMA exactly one (1, H) row per example straight from HBM,
    # overlapped with the weight copies above.
    # TODO(synk): for large serving batch sizes, roll this into lax.fori_loop
    #             with a small semaphore ring instead of static unrolling.
    row_copies = []
    for b in range(B):
        cp = pltpu.make_async_copy(
            hidden_hbm_ref.at[b, pl.ds(last_pos_ref[b], 1), :],   # (1, H) in HBM
            rep_ref.at[pl.ds(b, 1), :],                           # (1, H) in VMEM
            row_sem.at[b])
        cp.start()
        row_copies.append(cp)

    for cp in row_copies:
        cp.wait()
    w1_cp.wait()
    w2_cp.wait()

    rep = rep_ref[...].astype(jnp.bfloat16)                       # (B_pad, H) bf16

    # Both heads' first layers in a single MXU pass (f32 accumulation) + tanh.
    h = jnp.tanh(
        jnp.dot(rep, w1_vmem[...], preferred_element_type=jnp.float32)
        + b1_ref[...].astype(jnp.float32))                        # (B_pad, 2*INNER)

    # Both out_proj layers in one compact block-diagonal matmul.
    out_ref[...] = (
        jnp.dot(h.astype(jnp.bfloat16), w2_vmem[...],
                preferred_element_type=jnp.float32)
        + b2_ref[...].astype(jnp.float32))                        # (B_pad, OUT_COLS)


def make_head_params(key, input_dim, inner_dim, num_classes):
    """Deterministic Linear params (PyTorch-like uniform(-1/sqrt(fan_in), ...))."""
    k1, k2, k3, k4 = jax.random.split(key, 4)
    lim1 = 1.0 / np.sqrt(input_dim)
    lim2 = 1.0 / np.sqrt(inner_dim)
    w1 = jax.random.uniform(k1, (input_dim, inner_dim), jnp.float32, -lim1, lim1)
    b1 = jax.random.uniform(k2, (1, inner_dim), jnp.float32, -lim1, lim1)
    w2 = jax.random.uniform(k3, (inner_dim, num_classes), jnp.float32, -lim2, lim2)
    b2 = jax.random.uniform(k4, (1, num_classes), jnp.float32, -lim2, lim2)
    return w1, b1, w2, b2


def fuse_head_params(cls_params, cnt_params, dtype=WEIGHT_DTYPE):
    """Fuse both heads: one (H, 2*INNER) dense + one compact block-diag out_proj.

    Weights are stored in bf16 (MXU-native); accumulation stays f32 in-kernel.
    """
    w1c, b1c, w2c, b2c = cls_params
    w1k, b1k, w2k, b2k = cnt_params
    w1 = jnp.concatenate([w1c, w1k], axis=1).astype(dtype)         # (H, 2*INNER)
    b1 = jnp.concatenate([b1c, b1k], axis=1).astype(dtype)         # (1, 2*INNER)
    w2 = jnp.zeros((2 * INNER_DIM, OUT_COLS), jnp.float32)
    w2 = w2.at[:INNER_DIM, :NUM_CLASSES].set(w2c)
    w2 = w2.at[INNER_DIM:, NUM_CLASSES:].set(w2k)                  # block-diagonal
    b2 = jnp.concatenate([b2c, b2k], axis=1)                       # (1, OUT_COLS)
    return w1, b1, w2.astype(dtype), b2.astype(dtype)


def check_eos_counts(input_ids):
    """Host-side debug assertion mirroring the PyTorch ValueError. NOT on the hot path."""
    counts = np.asarray(jnp.sum(input_ids == EOS_TOKEN_ID, axis=1))
    if len(np.unique(counts)) > 1:
        raise ValueError('All examples must have the same number of <eos> tokens.')


def _last_eos_pos(input_ids, seq_len):
    positions = jnp.arange(seq_len, dtype=jnp.int32)
    eos_mask = input_ids == EOS_TOKEN_ID
    last_pos = jnp.max(jnp.where(eos_mask, positions[None, :], -1), axis=1)
    # Guard malformed rows without <eos>: clamp to 0 so the DMA stays in bounds.
    # TODO(synk): PyTorch would misalign/raise here; clamping to token 0 is the
    #             documented inference-time fallback.
    return jnp.maximum(last_pos, 0).astype(jnp.int32)


@jax.jit
def meta_model_forward(hidden_states, input_ids, w1, b1, w2, b2):
    """Jittable forward: last-<eos> index computation + Pallas gather/head kernel."""
    B, S, H = hidden_states.shape
    B_pad = max(8, ((B + 7) // 8) * 8)      # full sublane group for the output

    last_pos = _last_eos_pos(input_ids, S)

    weight_bytes = int((w1.size + b1.size + w2.size + b2.size) * w1.dtype.itemsize)
    cost = pl.CostEstimate(
        flops=2 * B_pad * H * (2 * INNER_DIM)
              + 2 * B_pad * (2 * INNER_DIM) * OUT_COLS,
        transcendentals=B_pad * 2 * INNER_DIM,
        bytes_accessed=weight_bytes + B * H * 4 + B_pad * OUT_COLS * 4 + B * 4,
    )

    vmem = pl.BlockSpec(memory_space=pltpu.MemorySpace.VMEM)
    hbm = pl.BlockSpec(memory_space=pl.ANY)
    out = pl.pallas_call(
        meta_head_kernel,
        out_shape=jax.ShapeDtypeStruct((B_pad, OUT_COLS), jnp.float32),
        in_specs=[
            pl.BlockSpec(memory_space=pltpu.MemorySpace.SMEM),    # last_pos scalars
            hbm,                                                  # hidden stays in HBM
            hbm,                                                  # w1: manual DMA
            vmem,                                                 # b1 (tiny) auto
            hbm,                                                  # w2: manual DMA
            vmem,                                                 # b2 (tiny) auto
        ],
        out_specs=vmem,
        scratch_shapes=[
            pltpu.VMEM((H, 2 * INNER_DIM), WEIGHT_DTYPE),         # w1 VMEM landing
            pltpu.VMEM((2 * INNER_DIM, OUT_COLS), WEIGHT_DTYPE),  # w2 VMEM landing
            pltpu.VMEM((B_pad, H), jnp.float32),                  # gathered reps
            pltpu.SemaphoreType.DMA((B,)),                        # per-row gather sems
            pltpu.SemaphoreType.DMA((2,)),                        # weight sems
        ],
        cost_estimate=cost,
    )(last_pos, hidden_states, w1, b1, w2, b2)

    logits = out[:B, :NUM_CLASSES]
    c_logits = out[:B, NUM_CLASSES:OUT_COLS]
    return logits, c_logits


def meta_model_ref(hidden_states, input_ids, cls_params, cnt_params):
    """Pure-JAX f32 reference matching the PyTorch module semantics."""
    S = hidden_states.shape[1]
    last_pos = _last_eos_pos(input_ids, S)
    rep = jnp.take_along_axis(hidden_states, last_pos[:, None, None], axis=1)[:, 0, :]

    hi = jax.lax.Precision.HIGHEST

    def head(x, p):
        w1, b1, w2, b2 = p
        h = jnp.tanh(jnp.dot(x, w1, precision=hi) + b1[0])
        return jnp.dot(h, w2, precision=hi) + b2[0]

    return head(rep, cls_params), head(rep, cnt_params)


def meta_model_bf16_ref(hidden_states, input_ids, w1, b1, w2, b2):
    """Pure-JAX reference mirroring the kernel's bf16-weight / f32-accum arithmetic."""
    S = hidden_states.shape[1]
    last_pos = _last_eos_pos(input_ids, S)
    rep = jnp.take_along_axis(hidden_states, last_pos[:, None, None], axis=1)[:, 0, :]
    rep16 = rep.astype(jnp.bfloat16)
    h = jnp.tanh(jnp.dot(rep16, w1, preferred_element_type=jnp.float32)
                 + b1.astype(jnp.float32))
    out = (jnp.dot(h.astype(jnp.bfloat16), w2, preferred_element_type=jnp.float32)
           + b2.astype(jnp.float32))
    return out[:, :NUM_CLASSES], out[:, NUM_CLASSES:OUT_COLS]


if __name__ == "__main__":
    B, S, H = 2, 16, INPUT_DIM

    key = jax.random.PRNGKey(0)
    k_hidden, k_ids, k_cls, k_cnt = jax.random.split(key, 4)

    # Simulated BART encoder output (the pretrained backbone is not reproducible here).
    hidden_states = jax.random.normal(k_hidden, (B, S, H), dtype=jnp.float32)

    # Token ids: random in [10, 1000) so nothing collides with eos id = 2,
    # then place exactly two <eos> tokens per example. np.array makes a
    # writable host copy of the device array.
    ids = np.array(jax.random.randint(k_ids, (B, S), 10, 1000), dtype=np.int32)
    ids[0, 5] = EOS_TOKEN_ID
    ids[0, 12] = EOS_TOKEN_ID
    ids[1, 3] = EOS_TOKEN_ID
    ids[1, 15] = EOS_TOKEN_ID
    input_ids = jnp.asarray(ids)

    cls_params = make_head_params(k_cls, INPUT_DIM, INNER_DIM, NUM_CLASSES)
    cnt_params = make_head_params(k_cnt, INPUT_DIM, INNER_DIM, NUM_CLASSES)

    # Debug-only check, deliberately outside the jitted forward path.
    check_eos_counts(input_ids)

    fused = fuse_head_params(cls_params, cnt_params)
    logits, c_logits = meta_model_forward(hidden_states, input_ids, *fused)
    jax.block_until_ready((logits, c_logits))

    # Tight check: kernel vs bf16-matched pure-JAX arithmetic (validates gather,
    # fusion and indexing logic).
    m_logits, m_c_logits = meta_model_bf16_ref(hidden_states, input_ids, *fused)
    np.testing.assert_allclose(np.asarray(logits), np.asarray(m_logits),
                               rtol=5e-3, atol=5e-3)
    np.testing.assert_allclose(np.asarray(c_logits), np.asarray(m_c_logits),
                               rtol=5e-3, atol=5e-3)

    # Semantic check vs the f32 module reference; tolerance bounds the bf16
    # weight-quantization error (accumulation stays f32).
    ref_logits, ref_c_logits = meta_model_ref(hidden_states, input_ids,
                                              cls_params, cnt_params)
    np.testing.assert_allclose(np.asarray(logits), np.asarray(ref_logits),
                               rtol=2e-2, atol=2e-2)
    np.testing.assert_allclose(np.asarray(c_logits), np.asarray(ref_c_logits),
                               rtol=2e-2, atol=2e-2)

    assert logits.shape == (B, NUM_CLASSES) and c_logits.shape == (B, NUM_CLASSES)
    print("KERNEL_OK")
</pallas_src>

<mosaic_0001>
module attributes {stable_mosaic.version = 11 : i64} {
  func.func @meta_head_kernel(%arg0: memref<2xi32, #tpu.memory_space<smem>>, %arg1: memref<2x16x1024xf32, #tpu.memory_space<any>>, %arg2: memref<1024x1024xbf16, #tpu.memory_space<any>>, %arg3: memref<1x1024xbf16, #tpu.memory_space<vmem>>, %arg4: memref<1024x18xbf16, #tpu.memory_space<any>>, %arg5: memref<1x18xbf16, #tpu.memory_space<vmem>>, %arg6: memref<8x18xf32, #tpu.memory_space<vmem>>, %arg7: memref<1024x1024xbf16, #tpu.memory_space<vmem>>, %arg8: memref<1024x18xbf16, #tpu.memory_space<vmem>>, %arg9: memref<8x1024xf32, #tpu.memory_space<vmem>>, %arg10: memref<2x!tpu.dma_semaphore, #tpu.memory_space<semaphore_mem>>, %arg11: memref<2x!tpu.dma_semaphore, #tpu.memory_space<semaphore_mem>>) attributes {dimension_semantics = [], scalar_prefetch = 0 : i64, scratch_operands = 5 : i64, tpu.core_type = #tpu.core_type<tc>} {
    %c0_i32 = arith.constant 0 : i32
    %0 = tpu.memref_slice %arg11[%c0_i32] : memref<2x!tpu.dma_semaphore, #tpu.memory_space<semaphore_mem>> -> memref<1x!tpu.dma_semaphore, #tpu.memory_space<semaphore_mem>>
    %1 = tpu.memref_squeeze %0 : memref<1x!tpu.dma_semaphore, #tpu.memory_space<semaphore_mem>> -> memref<!tpu.dma_semaphore, #tpu.memory_space<semaphore_mem>>
    tpu.enqueue_dma source(%arg2 : memref<1024x1024xbf16, #tpu.memory_space<any>>) target(%arg7 : memref<1024x1024xbf16, #tpu.memory_space<vmem>>) target_semaphore(%1 : memref<!tpu.dma_semaphore, #tpu.memory_space<semaphore_mem>>)
    %c1_i32 = arith.constant 1 : i32
    %2 = tpu.memref_slice %arg11[%c1_i32] : memref<2x!tpu.dma_semaphore, #tpu.memory_space<semaphore_mem>> -> memref<1x!tpu.dma_semaphore, #tpu.memory_space<semaphore_mem>>
    %3 = tpu.memref_squeeze %2 : memref<1x!tpu.dma_semaphore, #tpu.memory_space<semaphore_mem>> -> memref<!tpu.dma_semaphore, #tpu.memory_space<semaphore_mem>>
    tpu.enqueue_dma source(%arg4 : memref<1024x18xbf16, #tpu.memory_space<any>>) target(%arg8 : memref<1024x18xbf16, #tpu.memory_space<vmem>>) target_semaphore(%3 : memref<!tpu.dma_semaphore, #tpu.memory_space<semaphore_mem>>)
    %cst = arith.constant 0.000000e+00 : f32
    %4 = vector.broadcast %cst : f32 to vector<6x1024xf32>
    %c2 = arith.constant 2 : index
    %c0 = arith.constant 0 : index
    %5 = vector.load %arg9[%c2, %c0] : memref<8x1024xf32, #tpu.memory_space<vmem>>, vector<6x1024xf32>
    tpu.vector_store %arg9[%c2, %c0], %4 {strides = array<i32>} : memref<8x1024xf32, #tpu.memory_space<vmem>>, vector<6x1024xf32>,
    %c0_0 = arith.constant 0 : index
    %6 = memref.load %arg0[%c0_0] : memref<2xi32, #tpu.memory_space<smem>>
    %c0_i32_1 = arith.constant 0 : i32
    %c0_i32_2 = arith.constant 0 : i32
    %c0_i32_3 = arith.constant 0 : i32
    %7 = tpu.memref_slice %arg1[%c0_i32_1, %6, %c0_i32_3] : memref<2x16x1024xf32, #tpu.memory_space<any>> -> memref<1x1x1024xf32, #tpu.memory_space<any>>
    %8 = tpu.memref_squeeze %7 : memref<1x1x1024xf32, #tpu.memory_space<any>> -> memref<1x1024xf32, #tpu.memory_space<any>>
    %c0_i32_4 = arith.constant 0 : i32
    %c0_i32_5 = arith.constant 0 : i32
    %9 = tpu.memref_slice %arg9[%c0_i32_4, %c0_i32_5] : memref<8x1024xf32, #tpu.memory_space<vmem>> -> memref<1x1024xf32, #tpu.memory_space<vmem>>
    %10 = tpu.memref_slice %arg10[%c0_i32_2] : memref<2x!tpu.dma_semaphore, #tpu.memory_space<semaphore_mem>> -> memref<1x!tpu.dma_semaphore, #tpu.memory_space<semaphore_mem>>
    %11 = tpu.memref_squeeze %10 : memref<1x!tpu.dma_semaphore, #tpu.memory_space<semaphore_mem>> -> memref<!tpu.dma_semaphore, #tpu.memory_space<semaphore_mem>>
    tpu.enqueue_dma source(%8 : memref<1x1024xf32, #tpu.memory_space<any>>) target(%9 : memref<1x1024xf32, #tpu.memory_space<vmem>>) target_semaphore(%11 : memref<!tpu.dma_semaphore, #tpu.memory_space<semaphore_mem>>)
    %c1 = arith.constant 1 : index
    %12 = memref.load %arg0[%c1] : memref<2xi32, #tpu.memory_space<smem>>
    %c1_i32_6 = arith.constant 1 : i32
    %c1_i32_7 = arith.constant 1 : i32
    %c0_i32_8 = arith.constant 0 : i32
    %13 = tpu.memref_slice %arg1[%c1_i32_6, %12, %c0_i32_8] : memref<2x16x1024xf32, #tpu.memory_space<any>> -> memref<1x1x1024xf32, #tpu.memory_space<any>>
    %14 = tpu.memref_squeeze %13 : memref<1x1x1024xf32, #tpu.memory_space<any>> -> memref<1x1024xf32, #tpu.memory_space<any>>
    %c1_i32_9 = arith.constant 1 : i32
    %c0_i32_10 = arith.constant 0 : i32
    %15 = tpu.memref_slice %arg9[%c1_i32_9, %c0_i32_10] : memref<8x1024xf32, #tpu.memory_space<vmem>> -> memref<1x1024xf32, #tpu.memory_space<vmem>>
    %16 = tpu.memref_slice %arg10[%c1_i32_7] : memref<2x!tpu.dma_semaphore, #tpu.memory_space<semaphore_mem>> -> memref<1x!tpu.dma_semaphore, #tpu.memory_space<semaphore_mem>>
    %17 = tpu.memref_squeeze %16 : memref<1x!tpu.dma_semaphore, #tpu.memory_space<semaphore_mem>> -> memref<!tpu.dma_semaphore, #tpu.memory_space<semaphore_mem>>
    tpu.enqueue_dma source(%14 : memref<1x1024xf32, #tpu.memory_space<any>>) target(%15 : memref<1x1024xf32, #tpu.memory_space<vmem>>) target_semaphore(%17 : memref<!tpu.dma_semaphore, #tpu.memory_space<semaphore_mem>>)
    %c0_i32_11 = arith.constant 0 : i32
    %c0_i32_12 = arith.constant 0 : i32
    %c0_i32_13 = arith.constant 0 : i32
    %18 = tpu.memref_slice %arg1[%c0_i32_11, %6, %c0_i32_13] : memref<2x16x1024xf32, #tpu.memory_space<any>> -> memref<1x1x1024xf32, #tpu.memory_space<any>>
    %19 = tpu.memref_squeeze %18 : memref<1x1x1024xf32, #tpu.memory_space<any>> -> memref<1x1024xf32, #tpu.memory_space<any>>
    %c0_i32_14 = arith.constant 0 : i32
    %c0_i32_15 = arith.constant 0 : i32
    %20 = tpu.memref_slice %arg9[%c0_i32_14, %c0_i32_15] : memref<8x1024xf32, #tpu.memory_space<vmem>> -> memref<1x1024xf32, #tpu.memory_space<vmem>>
    %21 = tpu.memref_slice %arg10[%c0_i32_12] : memref<2x!tpu.dma_semaphore, #tpu.memory_space<semaphore_mem>> -> memref<1x!tpu.dma_semaphore, #tpu.memory_space<semaphore_mem>>
    %22 = tpu.memref_squeeze %21 : memref<1x!tpu.dma_semaphore, #tpu.memory_space<semaphore_mem>> -> memref<!tpu.dma_semaphore, #tpu.memory_space<semaphore_mem>>
    tpu.wait_dma2 semaphore(%22 : memref<!tpu.dma_semaphore, #tpu.memory_space<semaphore_mem>>) src(%19 : memref<1x1024xf32, #tpu.memory_space<any>>) dst(%20 : memref<1x1024xf32, #tpu.memory_space<vmem>>)
    %c1_i32_16 = arith.constant 1 : i32
    %c1_i32_17 = arith.constant 1 : i32
    %c0_i32_18 = arith.constant 0 : i32
    %23 = tpu.memref_slice %arg1[%c1_i32_16, %12, %c0_i32_18] : memref<2x16x1024xf32, #tpu.memory_space<any>> -> memref<1x1x1024xf32, #tpu.memory_space<any>>
    %24 = tpu.memref_squeeze %23 : memref<1x1x1024xf32, #tpu.memory_space<any>> -> memref<1x1024xf32, #tpu.memory_space<any>>
    %c1_i32_19 = arith.constant 1 : i32
    %c0_i32_20 = arith.constant 0 : i32
    %25 = tpu.memref_slice %arg9[%c1_i32_19, %c0_i32_20] : memref<8x1024xf32, #tpu.memory_space<vmem>> -> memref<1x1024xf32, #tpu.memory_space<vmem>>
    %26 = tpu.memref_slice %arg10[%c1_i32_17] : memref<2x!tpu.dma_semaphore, #tpu.memory_space<semaphore_mem>> -> memref<1x!tpu.dma_semaphore, #tpu.memory_space<semaphore_mem>>
    %27 = tpu.memref_squeeze %26 : memref<1x!tpu.dma_semaphore, #tpu.memory_space<semaphore_mem>> -> memref<!tpu.dma_semaphore, #tpu.memory_space<semaphore_mem>>
    tpu.wait_dma2 semaphore(%27 : memref<!tpu.dma_semaphore, #tpu.memory_space<semaphore_mem>>) src(%24 : memref<1x1024xf32, #tpu.memory_space<any>>) dst(%25 : memref<1x1024xf32, #tpu.memory_space<vmem>>)
    %c0_i32_21 = arith.constant 0 : i32
    %28 = tpu.memref_slice %arg11[%c0_i32_21] : memref<2x!tpu.dma_semaphore, #tpu.memory_space<semaphore_mem>> -> memref<1x!tpu.dma_semaphore, #tpu.memory_space<semaphore_mem>>
    %29 = tpu.memref_squeeze %28 : memref<1x!tpu.dma_semaphore, #tpu.memory_space<semaphore_mem>> -> memref<!tpu.dma_semaphore, #tpu.memory_space<semaphore_mem>>
    tpu.wait_dma2 semaphore(%29 : memref<!tpu.dma_semaphore, #tpu.memory_space<semaphore_mem>>) src(%arg2 : memref<1024x1024xbf16, #tpu.memory_space<any>>) dst(%arg7 : memref<1024x1024xbf16, #tpu.memory_space<vmem>>)
    %c1_i32_22 = arith.constant 1 : i32
    %30 = tpu.memref_slice %arg11[%c1_i32_22] : memref<2x!tpu.dma_semaphore, #tpu.memory_space<semaphore_mem>> -> memref<1x!tpu.dma_semaphore, #tpu.memory_space<semaphore_mem>>
    %31 = tpu.memref_squeeze %30 : memref<1x!tpu.dma_semaphore, #tpu.memory_space<semaphore_mem>> -> memref<!tpu.dma_semaphore, #tpu.memory_space<semaphore_mem>>
    tpu.wait_dma2 semaphore(%31 : memref<!tpu.dma_semaphore, #tpu.memory_space<semaphore_mem>>) src(%arg4 : memref<1024x18xbf16, #tpu.memory_space<any>>) dst(%arg8 : memref<1024x18xbf16, #tpu.memory_space<vmem>>)
    %c0_23 = arith.constant 0 : index
    %c0_24 = arith.constant 0 : index
    %32 = vector.load %arg9[%c0_23, %c0_24] : memref<8x1024xf32, #tpu.memory_space<vmem>>, vector<8x1024xf32>
    %33 = arith.truncf %32 : vector<8x1024xf32> to vector<8x1024xbf16>
    %c0_25 = arith.constant 0 : index
    %c0_26 = arith.constant 0 : index
    %34 = vector.load %arg7[%c0_25, %c0_26] : memref<1024x1024xbf16, #tpu.memory_space<vmem>>, vector<1024x1024xbf16>
    %cst_27 = arith.constant dense<0.000000e+00> : vector<8x1024xf32>
    %35 = tpu.matmul %33, %34, %cst_27 {dimension_numbers = #tpu.dot_dimension_numbers<[1], [0], [0], [1], [0, 0, 1, 1], [], []>} : vector<8x1024xbf16>, vector<1024x1024xbf16>, vector<8x1024xf32> -> vector<8x1024xf32>
    %c0_28 = arith.constant 0 : index
    %c0_29 = arith.constant 0 : index
    %36 = vector.load %arg3[%c0_28, %c0_29] : memref<1x1024xbf16, #tpu.memory_space<vmem>>, vector<1x1024xbf16>
    %37 = arith.extf %36 : vector<1x1024xbf16> to vector<1x1024xf32>
    %38 = vector.broadcast %37 : vector<1x1024xf32> to vector<8x1024xf32>
    %39 = arith.addf %35, %38 : vector<8x1024xf32>
    %40 = math.tanh %39 : vector<8x1024xf32>
    %41 = arith.truncf %40 : vector<8x1024xf32> to vector<8x1024xbf16>
    %c0_30 = arith.constant 0 : index
    %c0_31 = arith.constant 0 : index
    %42 = vector.load %arg8[%c0_30, %c0_31] : memref<1024x18xbf16, #tpu.memory_space<vmem>>, vector<1024x18xbf16>
    %cst_32 = arith.constant dense<0.000000e+00> : vector<8x18xf32>
    %43 = tpu.matmul %41, %42, %cst_32 {dimension_numbers = #tpu.dot_dimension_numbers<[1], [0], [0], [1], [0, 0, 1, 1], [], []>} : vector<8x1024xbf16>, vector<1024x18xbf16>, vector<8x18xf32> -> vector<8x18xf32>
    %c0_33 = arith.constant 0 : index
    %c0_34 = arith.constant 0 : index
    %44 = vector.load %arg5[%c0_33, %c0_34] : memref<1x18xbf16, #tpu.memory_space<vmem>>, vector<1x18xbf16>
    %45 = arith.extf %44 : vector<1x18xbf16> to vector<1x18xf32>
    %46 = vector.broadcast %45 : vector<1x18xf32> to vector<8x18xf32>
    %47 = arith.addf %43, %46 : vector<8x18xf32>
    %c0_35 = arith.constant 0 : index
    %c0_36 = arith.constant 0 : index
    %48 = vector.load %arg6[%c0_35, %c0_36] : memref<8x18xf32, #tpu.memory_space<vmem>>, vector<8x18xf32>
    tpu.vector_store %arg6[%c0_35, %c0_36], %47 {strides = array<i32>} : memref<8x18xf32, #tpu.memory_space<vmem>>, vector<8x18xf32>,
    return
  }
}

</mosaic_0001>

<llo_original>
// kernel: meta_model_forward.1
$region0: #{meta_model_forward.1}
  #allocation0 [shape = 'u32[]', space=smem, size = 0x4, offset = 0x4, fixed_abs, tag = 'smem constant byte address 0x4 - core index']
  #allocation1 [shape = 'u32[144,128]{1,0:T(1,128)}', space=vmem, size = 0x12000, scoped, tag = 'internal scratch']
  #allocation2 [shape = 'bf16[1024,1024]{1,0:T(16,128)(2,1)}', space=vmem, size = 0x200000, scoped, tag = 'scratch operand']
  #allocation3 [shape = 'bf16[1024,18]{1,0:T(16,128)(2,1)}', space=vmem, size = 0x40000, scoped, tag = 'scratch operand']
  #allocation4 [shape = 'f32[8,1024]{1,0:T(8,128)}', space=vmem, size = 0x8000, scoped, tag = 'scratch operand']
  #allocation5 [shape = 's32[2]{0}', space=sflag, size = 0x8, scoped, tag = 'scratch operand']
  #allocation6 [shape = 's32[2]{0}', space=sflag, size = 0x8, scoped, tag = 'scratch operand']
  #allocation13 [shape = 's32[]', space=sflag, size = 0x4, offset = 0, fixed_abs, tag = 'sflag constant byte address 0x0 - dummy sync flag']
  #allocation15 [shape = 's32[]', space=sflag, size = 0x4, offset = 0, fixed_abs, tag = 'sflag constant byte address 0x0 - dummy sync flag']
  #allocation16 [shape = 's32[]', space=sflag, size = 0x4, offset = 0, fixed_abs, tag = 'sflag constant byte address 0x0 - dummy sync flag']
  #allocation17 [shape = 's32[]', space=sflag, size = 0x4, offset = 0, fixed_abs, tag = 'sflag constant byte address 0x0 - dummy sync flag']
  %s0 = inlined_call_operand.vmem [shape: s32[2], index: 0, kind: input, shape index: {}]
  %s1 = inlined_call_operand.hbm [shape: f32[2,16,1024], index: 1, kind: input, shape index: {}]
  %s2 = inlined_call_operand.hbm [shape: bf16[1024,1024], index: 2, kind: input, shape index: {}]
  %s3 = inlined_call_operand.hbm [shape: bf16[1,1024], index: 3, kind: input, shape index: {}]
  %s4 = inlined_call_operand.vmem [shape: bf16[1024,18], index: 4, kind: input, shape index: {}]
  %s5 = inlined_call_operand.hbm [shape: bf16[1,18], index: 5, kind: input, shape index: {}]
  %s6 = inlined_call_operand.vmem [shape: f32[8,18], index: 6, kind: output, shape index: {}]
  %s7 = sld [smem:[#allocation0]]
  $region68: #{meta_model_forward.1} parent=0
    _
  %s9 = ssub.s32 1, %s7
  %s10 = scalar_select 0, %s9, %s7
  $region1: #{meta_model_forward.1} parent=0
    #allocation7 [shape = 'u8[512]{0}', space=smem, size = 0x200, scoped, tag = 'input window, operand 0, single buffered']
    #allocation8 [shape = 's32[1]{0}', space=sflag, size = 0x4, scoped, tag = 'scoped memory for meta_model_forward.1']
    #allocation9 [shape = 's32[1]{0}', space=sflag, size = 0x4, scoped, tag = 'scoped memory for meta_model_forward.1']
    #allocation10 [shape = 'u8[4096]{0}', space=vmem, size = 0x1000, scoped, tag = 'input window, operand 3, single buffered']
    #allocation11 [shape = 'u8[512]{0}', space=vmem, size = 0x400, scoped, tag = 'input window, operand 5, single buffered']
    #allocation12 [shape = 's32[1]{0}', space=sflag, size = 0x4, scoped, tag = 'scoped memory for meta_model_forward.1']
    #allocation14 [shape = 'u32[9]{0}', space=smem, size = 0x24, scoped, tag = 'DMA stride descriptor']
    %11 = vsyncpa [#allocation9], 0
    %12 = vsyncpa [#allocation8], 0
    %13 = vsyncpa [#allocation12], 0
    // Predicated region
    $region2: #{meta_model_forward.1} parent=1 // pred_check
      _
    $region3: #{meta_model_forward.1} parent=1 // pred_check_branch
      %15 = sbr.rel (0) target = $region5
    $region4: #{meta_model_forward.1} parent=1 // pred_region
      %s17 = ssub.s32 16, 16
      %18 = vsyncadd [#allocation9], %s17
      %s20 = sshll.u32 %s0, 4
      %s21 = int_to_ptr.vmem [resolvable:$true] %s20
      %23 = dma.vmem_to_smem %s21, 16, [#allocation7], [#allocation9]
    $region5: #{meta_model_forward.1} parent=1 // pred_fallthru
      _
    // Predicated region
    $region6: #{meta_model_forward.1} parent=1 // pred_check
      _
    $region7: #{meta_model_forward.1} parent=1 // pred_check_branch
      %25 = sbr.rel (0) target = $region9
    $region8: #{meta_model_forward.1} parent=1 // pred_region
      %s27 = ssub.s32 128, 128
      %28 = vsyncadd [#allocation8], %s27
      %s30 = sshll.u32 [#allocation10], 4
      %s31 = int_to_ptr.vmem [resolvable:$true] %s30
      %33 = dma.hbm_to_vmem [thread:$0]  %s3, 128, %s31, [#allocation8]
    $region9: #{meta_model_forward.1} parent=1 // pred_fallthru
      _
    // Predicated region
    $region10: #{meta_model_forward.1} parent=1 // pred_check
      _
    $region11: #{meta_model_forward.1} parent=1 // pred_check_branch
      %35 = sbr.rel (0) target = $region13
    $region12: #{meta_model_forward.1} parent=1 // pred_region
      %s37 = ssub.s32 16, 16
      %38 = vsyncadd [#allocation12], %s37
      %s40 = sshll.u32 [#allocation11], 4
      %s41 = int_to_ptr.vmem [resolvable:$true] %s40
      %43 = dma.hbm_to_vmem [thread:$0]  %s5, 16, %s41, [#allocation12]
    $region13: #{meta_model_forward.1} parent=1 // pred_fallthru
      _
    // Predicated region
    $region14: #{meta_model_forward.1} parent=1 // pred_check
      _
    $region15: #{meta_model_forward.1} parent=1 // pred_check_branch
      %45 = sbr.rel (0) target = $region17
    $region16: #{meta_model_forward.1} parent=1 // pred_region
      %46 = dma.done [#allocation9], 16
    $region17: #{meta_model_forward.1} parent=1 // pred_fallthru
      _
    // Predicated region
    $region18: #{meta_model_forward.1} parent=1 // pred_check
      _
    $region19: #{meta_model_forward.1} parent=1 // pred_check_branch
      %48 = sbr.rel (0) target = $region21
    $region20: #{meta_model_forward.1} parent=1 // pred_region
      %49 = dma.done [#allocation8], 128
    $region21: #{meta_model_forward.1} parent=1 // pred_fallthru
      _
    // Predicated region
    $region22: #{meta_model_forward.1} parent=1 // pred_check
      _
    $region23: #{meta_model_forward.1} parent=1 // pred_check_branch
      %51 = sbr.rel (0) target = $region25
    $region24: #{meta_model_forward.1} parent=1 // pred_region
      %52 = dma.done [#allocation12], 16
    $region25: #{meta_model_forward.1} parent=1 // pred_fallthru
      _
    %53 = sfence
    %s56 = sshll.u32 1, 14
    %s57 = sxor.u32 4294967295, %s56
    %s59 = sld [smem:[#allocation0]]
    %s60 = sadd.s32 2, %s59
    %s62 = sshll.u32 7, 26
    %s63 = sxor.u32 4294967295, %s62
    %s64 = sand.u32 0, %s63
    %s65 = sshll.u32 %s60, 26
    %s66 = sor.u32 %s64, %s65
    %s67 = sshll.u32 [#allocation2], 4
    %s68 = int_to_ptr.vmem [resolvable:$true] %s67
    %71 = sst [smem:[#allocation14]] 1024
    %s72 = scalar_lea.smem [#allocation14], 1
    %73 = sst [smem:[%s72]] 1024
    %s74 = scalar_lea.smem [#allocation14], 2
    %75 = sst [smem:[%s74]] 8
    %s76 = scalar_lea.smem [#allocation14], 3
    %77 = sst [smem:[%s76]] 64
    %s78 = scalar_lea.smem [#allocation14], 4
    %79 = sst [smem:[%s78]] 128
    %s80 = scalar_lea.smem [#allocation14], 5
    %81 = sst [smem:[%s80]] 2
    %s82 = scalar_lea.smem [#allocation14], 6
    %83 = sst [smem:[%s82]] 512
    %s84 = scalar_lea.smem [#allocation14], 7
    %85 = sst [smem:[%s84]] 64
    %s86 = scalar_lea.smem [#allocation14], 8
    %87 = sst [smem:[%s86]] 4
    %89 = dma.general %s2, 65536, %s68, [#allocation6], [#allocation13], [#allocation14], %s66, 0
    %s90 = scalar_lea.sflag [#allocation6], 1
    %p92 = scmp.lt.u32.totalorder 512, 8
    %p93 = pneg %p92
    // Predicated region
    $region26: #{meta_model_forward.1} parent=1 // pred_check
      _
    $region27: #{meta_model_forward.1} parent=1 // pred_check_branch
      %95 = sbr.rel (%p92) target = $region29
    $region28: #{meta_model_forward.1} parent=1 // pred_region
      %s110 = sand.u32 512, 7
      %p111 = scmp.eq.s32.totalorder %s110, 0
      // Predicated region
      $region41: #{meta_model_forward.1} parent=28 // pred_check
        %p112 = pneg %p111
      $region42: #{meta_model_forward.1} parent=28 // pred_check_branch
        %114 = sbr.rel (%p112) target = $region44
      $region43: #{meta_model_forward.1} parent=28 // pred_region
        loop: start=0, step=1, limit=1
        $region45: #{meta_model_forward.1} parent=43 // loop_pre_header
          _
        $region46: #{meta_model_forward.1} parent=43 // loop_header
          %s116 = sphi 0, %s120
          %p117 = scmp.ge.s32.totalorder %s116, 1
          %s121 = sphi %s4, %s4
          %s122 = sphi [#allocation3], [#allocation3]
        $region47: #{meta_model_forward.1} parent=43 // loop_header_branch
          %119 = sbr.rel (%p117) target = $region51
        $region48: #{meta_model_forward.1} parent=43 // loop_body
          %v123 = vld [vmem:[%s121] sm:$0xff]
          %124 = vst [vmem:[%s122] sm:$0xff] %v123
          %v125 = vld [vmem:[%s121 + $0x8] sm:$0xff]
          %126 = vst [vmem:[%s122 + $0x8] sm:$0xff] %v125
          %v127 = vld [vmem:[%s121 + $0x10] sm:$0xff]
          %128 = vst [vmem:[%s122 + $0x10] sm:$0xff] %v127
          %v129 = vld [vmem:[%s121 + $0x18] sm:$0xff]
          %130 = vst [vmem:[%s122 + $0x18] sm:$0xff] %v129
          %v131 = vld [vmem:[%s121 + $0x20] sm:$0xff]
          %132 = vst [vmem:[%s122 + $0x20] sm:$0xff] %v131
          %v133 = vld [vmem:[%s121 + $0x28] sm:$0xff]
          %134 = vst [vmem:[%s122 + $0x28] sm:$0xff] %v133
          %v135 = vld [vmem:[%s121 + $0x30] sm:$0xff]
          %136 = vst [vmem:[%s122 + $0x30] sm:$0xff] %v135
          %v137 = vld [vmem:[%s121 + $0x38] sm:$0xff]
          %138 = vst [vmem:[%s122 + $0x38] sm:$0xff] %v137
          %v139 = vld [vmem:[%s121 + $0x40] sm:$0xff]
          %140 = vst [vmem:[%s122 + $0x40] sm:$0xff] %v139
          %v141 = vld [vmem:[%s121 + $0x48] sm:$0xff]
          %142 = vst [vmem:[%s122 + $0x48] sm:$0xff] %v141
          %v143 = vld [vmem:[%s121 + $0x50] sm:$0xff]
          %144 = vst [vmem:[%s122 + $0x50] sm:$0xff] %v143
          %v145 = vld [vmem:[%s121 + $0x58] sm:$0xff]
          %146 = vst [vmem:[%s122 + $0x58] sm:$0xff] %v145
          %v147 = vld [vmem:[%s121 + $0x60] sm:$0xff]
          %148 = vst [vmem:[%s122 + $0x60] sm:$0xff] %v147
          %v149 = vld [vmem:[%s121 + $0x68] sm:$0xff]
          %150 = vst [vmem:[%s122 + $0x68] sm:$0xff] %v149
          %v151 = vld [vmem:[%s121 + $0x70] sm:$0xff]
          %152 = vst [vmem:[%s122 + $0x70] sm:$0xff] %v151
          %v153 = vld [vmem:[%s121 + $0x78] sm:$0xff]
          %154 = vst [vmem:[%s122 + $0x78] sm:$0xff] %v153
          %v155 = vld [vmem:[%s121 + $0x80] sm:$0xff]
          %156 = vst [vmem:[%s122 + $0x80] sm:$0xff] %v155
          %v157 = vld [vmem:[%s121 + $0x88] sm:$0xff]
          %158 = vst [vmem:[%s122 + $0x88] sm:$0xff] %v157
          %v159 = vld [vmem:[%s121 + $0x90] sm:$0xff]
          %160 = vst [vmem:[%s122 + $0x90] sm:$0xff] %v159
          %v161 = vld [vmem:[%s121 + $0x98] sm:$0xff]
          %162 = vst [vmem:[%s122 + $0x98] sm:$0xff] %v161
          %v163 = vld [vmem:[%s121 + $0xa0] sm:$0xff]
          %164 = vst [vmem:[%s122 + $0xa0] sm:$0xff] %v163
          %v165 = vld [vmem:[%s121 + $0xa8] sm:$0xff]
          %166 = vst [vmem:[%s122 + $0xa8] sm:$0xff] %v165
          %v167 = vld [vmem:[%s121 + $0xb0] sm:$0xff]
          %168 = vst [vmem:[%s122 + $0xb0] sm:$0xff] %v167
          %v169 = vld [vmem:[%s121 + $0xb8] sm:$0xff]
          %170 = vst [vmem:[%s122 + $0xb8] sm:$0xff] %v169
          %v171 = vld [vmem:[%s121 + $0xc0] sm:$0xff]
          %172 = vst [vmem:[%s122 + $0xc0] sm:$0xff] %v171
          %v173 = vld [vmem:[%s121 + $0xc8] sm:$0xff]
          %174 = vst [vmem:[%s122 + $0xc8] sm:$0xff] %v173
          %v175 = vld [vmem:[%s121 + $0xd0] sm:$0xff]
          %176 = vst [vmem:[%s122 + $0xd0] sm:$0xff] %v175
          %v177 = vld [vmem:[%s121 + $0xd8] sm:$0xff]
          %178 = vst [vmem:[%s122 + $0xd8] sm:$0xff] %v177
          %v179 = vld [vmem:[%s121 + $0xe0] sm:$0xff]
          %180 = vst [vmem:[%s122 + $0xe0] sm:$0xff] %v179
          %v181 = vld [vmem:[%s121 + $0xe8] sm:$0xff]
          %182 = vst [vmem:[%s122 + $0xe8] sm:$0xff] %v181
          %v183 = vld [vmem:[%s121 + $0xf0] sm:$0xff]
          %184 = vst [vmem:[%s122 + $0xf0] sm:$0xff] %v183
          %v185 = vld [vmem:[%s121 + $0xf8] sm:$0xff]
          %186 = vst [vmem:[%s122 + $0xf8] sm:$0xff] %v185
          %v187 = vld [vmem:[%s121 + $0x100] sm:$0xff]
          %188 = vst [vmem:[%s122 + $0x100] sm:$0xff] %v187
          %v189 = vld [vmem:[%s121 + $0x108] sm:$0xff]
          %190 = vst [vmem:[%s122 + $0x108] sm:$0xff] %v189
          %v191 = vld [vmem:[%s121 + $0x110] sm:$0xff]
          %192 = vst [vmem:[%s122 + $0x110] sm:$0xff] %v191
          %v193 = vld [vmem:[%s121 + $0x118] sm:$0xff]
          %194 = vst [vmem:[%s122 + $0x118] sm:$0xff] %v193
          %v195 = vld [vmem:[%s121 + $0x120] sm:$0xff]
          %196 = vst [vmem:[%s122 + $0x120] sm:$0xff] %v195
          %v197 = vld [vmem:[%s121 + $0x128] sm:$0xff]
          %198 = vst [vmem:[%s122 + $0x128] sm:$0xff] %v197
          %v199 = vld [vmem:[%s121 + $0x130] sm:$0xff]
          %200 = vst [vmem:[%s122 + $0x130] sm:$0xff] %v199
          %v201 = vld [vmem:[%s121 + $0x138] sm:$0xff]
          %202 = vst [vmem:[%s122 + $0x138] sm:$0xff] %v201
          %v203 = vld [vmem:[%s121 + $0x140] sm:$0xff]
          %204 = vst [vmem:[%s122 + $0x140] sm:$0xff] %v203
          %v205 = vld [vmem:[%s121 + $0x148] sm:$0xff]
          %206 = vst [vmem:[%s122 + $0x148] sm:$0xff] %v205
          %v207 = vld [vmem:[%s121 + $0x150] sm:$0xff]
          %208 = vst [vmem:[%s122 + $0x150] sm:$0xff] %v207
          %v209 = vld [vmem:[%s121 + $0x158] sm:$0xff]
          %210 = vst [vmem:[%s122 + $0x158] sm:$0xff] %v209
          %v211 = vld [vmem:[%s121 + $0x160] sm:$0xff]
          %212 = vst [vmem:[%s122 + $0x160] sm:$0xff] %v211
          %v213 = vld [vmem:[%s121 + $0x168] sm:$0xff]
          %214 = vst [vmem:[%s122 + $0x168] sm:$0xff] %v213
          %v215 = vld [vmem:[%s121 + $0x170] sm:$0xff]
          %216 = vst [vmem:[%s122 + $0x170] sm:$0xff] %v215
          %v217 = vld [vmem:[%s121 + $0x178] sm:$0xff]
          %218 = vst [vmem:[%s122 + $0x178] sm:$0xff] %v217
          %v219 = vld [vmem:[%s121 + $0x180] sm:$0xff]
          %220 = vst [vmem:[%s122 + $0x180] sm:$0xff] %v219
          %v221 = vld [vmem:[%s121 + $0x188] sm:$0xff]
          %222 = vst [vmem:[%s122 + $0x188] sm:$0xff] %v221
          %v223 = vld [vmem:[%s121 + $0x190] sm:$0xff]
          %224 = vst [vmem:[%s122 + $0x190] sm:$0xff] %v223
          %v225 = vld [vmem:[%s121 + $0x198] sm:$0xff]
          %226 = vst [vmem:[%s122 + $0x198] sm:$0xff] %v225
          %v227 = vld [vmem:[%s121 + $0x1a0] sm:$0xff]
          %228 = vst [vmem:[%s122 + $0x1a0] sm:$0xff] %v227
          %v229 = vld [vmem:[%s121 + $0x1a8] sm:$0xff]
          %230 = vst [vmem:[%s122 + $0x1a8] sm:$0xff] %v229
          %v231 = vld [vmem:[%s121 + $0x1b0] sm:$0xff]
          %232 = vst [vmem:[%s122 + $0x1b0] sm:$0xff] %v231
          %v233 = vld [vmem:[%s121 + $0x1b8] sm:$0xff]
          %234 = vst [vmem:[%s122 + $0x1b8] sm:$0xff] %v233
          %v235 = vld [vmem:[%s121 + $0x1c0] sm:$0xff]
          %236 = vst [vmem:[%s122 + $0x1c0] sm:$0xff] %v235
          %v237 = vld [vmem:[%s121 + $0x1c8] sm:$0xff]
          %238 = vst [vmem:[%s122 + $0x1c8] sm:$0xff] %v237
          %v239 = vld [vmem:[%s121 + $0x1d0] sm:$0xff]
          %240 = vst [vmem:[%s122 + $0x1d0] sm:$0xff] %v239
          %v241 = vld [vmem:[%s121 + $0x1d8] sm:$0xff]
          %242 = vst [vmem:[%s122 + $0x1d8] sm:$0xff] %v241
          %v243 = vld [vmem:[%s121 + $0x1e0] sm:$0xff]
          %244 = vst [vmem:[%s122 + $0x1e0] sm:$0xff] %v243
          %v245 = vld [vmem:[%s121 + $0x1e8] sm:$0xff]
          %246 = vst [vmem:[%s122 + $0x1e8] sm:$0xff] %v245
          %v247 = vld [vmem:[%s121 + $0x1f0] sm:$0xff]
          %248 = vst [vmem:[%s122 + $0x1f0] sm:$0xff] %v247
          %v249 = vld [vmem:[%s121 + $0x1f8] sm:$0xff]
          %250 = vst [vmem:[%s122 + $0x1f8] sm:$0xff] %v249
        $region49: #{meta_model_forward.1} parent=43 // loop_footer
          %s120 = sadd.s32 1, %s116
        $region50: #{meta_model_forward.1} parent=43 // loop_footer_branch
          %115 = sbr.rel target = $region46
        $region51: #{meta_model_forward.1} parent=43 // loop_exit
          _
      $region44: #{meta_model_forward.1} parent=28 // pred_fallthru
        _
      %p251 = pneg %p111
      // Predicated region
      $region52: #{meta_model_forward.1} parent=28 // pred_check
        _
      $region53: #{meta_model_forward.1} parent=28 // pred_check_branch
        %253 = sbr.rel (%p111) target = $region55
      $region54: #{meta_model_forward.1} parent=28 // pred_region
        %s254 = sand.u32 512, 7
      $region55: #{meta_model_forward.1} parent=28 // pred_fallthru
        _
    $region29: #{meta_model_forward.1} parent=1 // pred_fallthru
      _
    // Predicated region
    $region30: #{meta_model_forward.1} parent=1 // pred_check
      %p96 = pneg %p92
    $region31: #{meta_model_forward.1} parent=1 // pred_check_branch
      %98 = sbr.rel (%p96) target = $region33
    $region32: #{meta_model_forward.1} parent=1 // pred_region
      %s99 = sshllo.u32 0, 512
      loop: start=0, step=1, limit=1
      $region34: #{meta_model_forward.1} parent=32 // loop_pre_header
        _
      $region35: #{meta_model_forward.1} parent=32 // loop_header
        %s101 = sphi 0, %s105
        %p102 = scmp.ge.s32.totalorder %s101, 1
        %s106 = sphi %s4, %s4
        %s107 = sphi [#allocation3], [#allocation3]
      $region36: #{meta_model_forward.1} parent=32 // loop_header_branch
        %104 = sbr.rel (%p102) target = $region40
      $region37: #{meta_model_forward.1} parent=32 // loop_body
        %v108 = vld [vmem:[%s106] sm:%s99]
        %109 = vst [vmem:[%s107] sm:%s99] %v108
      $region38: #{meta_model_forward.1} parent=32 // loop_footer
        %s105 = sadd.s32 1, %s101
      $region39: #{meta_model_forward.1} parent=32 // loop_footer_branch
        %100 = sbr.rel target = $region35
      $region40: #{meta_model_forward.1} parent=32 // loop_exit
        _
    $region33: #{meta_model_forward.1} parent=1 // pred_fallthru
      _
    // Predicated region
    $region56: #{meta_model_forward.1} parent=1 // pred_check
      _
    $region57: #{meta_model_forward.1} parent=1 // pred_check_branch
      %257 = sbr.rel (0) target = $region59
    $region58: #{meta_model_forward.1} parent=1 // pred_region
      %258 = vsyncadd %s90, 8192
    $region59: #{meta_model_forward.1} parent=1 // pred_fallthru
      _
    %259 = vst [vmem:[#allocation4] sm:$0xfc] 0.0
    %260 = vst [vmem:[#allocation4 + $0x8] sm:$0xfc] 0.0
    %261 = vst [vmem:[#allocation4 + $0x10] sm:$0xfc] 0.0
    %262 = vst [vmem:[#allocation4 + $0x18] sm:$0xfc] 0.0
    %263 = vst [vmem:[#allocation4 + $0x20] sm:$0xfc] 0.0
    %264 = vst [vmem:[#allocation4 + $0x28] sm:$0xfc] 0.0
    %265 = vst [vmem:[#allocation4 + $0x30] sm:$0xfc] 0.0
    %266 = vst [vmem:[#allocation4 + $0x38] sm:$0xfc] 0.0
    %s267 = sld [smem:[#allocation7]]
    %s268 = sshrl.u32 %s267, 3
    %s269 = sand.u32 %s267, 7
    %s270 = smul.u32 %s268, 64
    %s271 = sadd.s32 %s269, %s270
    %s272 = smul.addr %s271, 16
    %s273 = scalar_lea.hbm %s1, %s272
    %s275 = sshll.u32 [#allocation4], 4
    %s276 = int_to_ptr.vmem [resolvable:$true] %s275
    %278 = dma.hbm_to_vmem [thread:$0]  %s273, 128, %s276, [#allocation5], 128, 128, 1
    %s279 = sld [smem:[#allocation7 + $0x1]]
    %s280 = sshrl.u32 %s279, 3
    %s281 = sand.u32 %s279, 7
    %s282 = smul.u32 %s280, 64
    %s283 = sadd.s32 %s281, %s282
    %s284 = sadd.s32 %s283, 128
    %s285 = smul.addr %s284, 16
    %s286 = scalar_lea.hbm %s1, %s285
    %s287 = scalar_lea.vmem [#allocation4], 1
    %s288 = scalar_lea.sflag [#allocation5], 1
    %s290 = sshll.u32 %s287, 4
    %s291 = int_to_ptr.vmem [resolvable:$true] %s290
    %293 = dma.hbm_to_vmem [thread:$0]  %s286, 128, %s291, %s288, 128, 128, 1
    %s294 = smul.u32 1, 8
    %s295 = sshll.u32 %s294, 4
    %296 = dma.done [#allocation5], %s295
    %s297 = sshll.u32 %s294, 4
    %298 = dma.done %s288, %s297
    %s299 = smul.u32 4, 128
    %s300 = smul.u32 %s299, 8
    %s301 = sshll.u32 %s300, 4
    %302 = dma.done [#allocation6], %s301
    %s303 = smul.u32 %s299, 1
    %s304 = sshll.u32 %s303, 4
    %305 = dma.done %s90, %s304
    %v306 = vld [vmem:[#allocation4] sm:$0xff]
    %v307 = vld [vmem:[#allocation4 + $0x8] sm:$0xff]
    %v308 = vld [vmem:[#allocation4 + $0x10] sm:$0xff]
    %v309 = vld [vmem:[#allocation4 + $0x18] sm:$0xff]
    %v310 = vld [vmem:[#allocation4 + $0x20] sm:$0xff]
    %v311 = vld [vmem:[#allocation4 + $0x28] sm:$0xff]
    %v312 = vld [vmem:[#allocation4 + $0x30] sm:$0xff]
    %v313 = vld [vmem:[#allocation4 + $0x38] sm:$0xff]
    %v314 = vpack.c.bf16 %v306, %v306
    %v315 = vpack.c.bf16 %v307, %v307
    %v316 = vpack.c.bf16 %v308, %v308
    %v317 = vpack.c.bf16 %v309, %v309
    %v318 = vpack.c.bf16 %v310, %v310
    %v319 = vpack.c.bf16 %v311, %v311
    %v320 = vpack.c.bf16 %v312, %v312
    %v321 = vpack.c.bf16 %v313, %v313
    %v322 = vld [vmem:[#allocation2] sm:$0xff]
    %v323 = vld [vmem:[#allocation2 + $0x8] sm:$0xff]
    %v324 = vld [vmem:[#allocation2 + $0x10] sm:$0xff]
    %v325 = vld [vmem:[#allocation2 + $0x18] sm:$0xff]
    %v326 = vld [vmem:[#allocation2 + $0x20] sm:$0xff]
    %v327 = vld [vmem:[#allocation2 + $0x28] sm:$0xff]
    %v328 = vld [vmem:[#allocation2 + $0x30] sm:$0xff]
    %v329 = vld [vmem:[#allocation2 + $0x38] sm:$0xff]
    %v330 = vld [vmem:[#allocation2 + $0x40] sm:$0xff]
    %v331 = vld [vmem:[#allocation2 + $0x48] sm:$0xff]
    %v332 = vld [vmem:[#allocation2 + $0x50] sm:$0xff]
    %v333 = vld [vmem:[#allocation2 + $0x58] sm:$0xff]
    %v334 = vld [vmem:[#allocation2 + $0x60] sm:$0xff]
    %v335 = vld [vmem:[#allocation2 + $0x68] sm:$0xff]
    %v336 = vld [vmem:[#allocation2 + $0x70] sm:$0xff]
    %v337 = vld [vmem:[#allocation2 + $0x78] sm:$0xff]
    %v338 = vld [vmem:[#allocation2 + $0x80] sm:$0xff]
    %v339 = vld [vmem:[#allocation2 + $0x88] sm:$0xff]
    %v340 = vld [vmem:[#allocation2 + $0x90] sm:$0xff]
    %v341 = vld [vmem:[#allocation2 + $0x98] sm:$0xff]
    %v342 = vld [vmem:[#allocation2 + $0xa0] sm:$0xff]
    %v343 = vld [vmem:[#allocation2 + $0xa8] sm:$0xff]
    %v344 = vld [vmem:[#allocation2 + $0xb0] sm:$0xff]
    %v345 = vld [vmem:[#allocation2 + $0xb8] sm:$0xff]
    %v346 = vld [vmem:[#allocation2 + $0xc0] sm:$0xff]
    %v347 = vld [vmem:[#allocation2 + $0xc8] sm:$0xff]
    %v348 = vld [vmem:[#allocation2 + $0xd0] sm:$0xff]
    %v349 = vld [vmem:[#allocation2 + $0xd8] sm:$0xff]
    %v350 = vld [vmem:[#allocation2 + $0xe0] sm:$0xff]
    %v351 = vld [vmem:[#allocation2 + $0xe8] sm:$0xff]
    %v352 = vld [vmem:[#allocation2 + $0xf0] sm:$0xff]
    %v353 = vld [vmem:[#allocation2 + $0xf8] sm:$0xff]
    %v354 = vld [vmem:[#allocation2 + $0x100] sm:$0xff]
    %v355 = vld [vmem:[#allocation2 + $0x108] sm:$0xff]
    %v356 = vld [vmem:[#allocation2 + $0x110] sm:$0xff]
    %v357 = vld [vmem:[#allocation2 + $0x118] sm:$0xff]
    %v358 = vld [vmem:[#allocation2 + $0x120] sm:$0xff]
    %v359 = vld [vmem:[#allocation2 + $0x128] sm:$0xff]
    %v360 = vld [vmem:[#allocation2 + $0x130] sm:$0xff]
    %v361 = vld [vmem:[#allocation2 + $0x138] sm:$0xff]
    %v362 = vld [vmem:[#allocation2 + $0x140] sm:$0xff]
    %v363 = vld [vmem:[#allocation2 + $0x148] sm:$0xff]
    %v364 = vld [vmem:[#allocation2 + $0x150] sm:$0xff]
    %v365 = vld [vmem:[#allocation2 + $0x158] sm:$0xff]
    %v366 = vld [vmem:[#allocation2 + $0x160] sm:$0xff]
    %v367 = vld [vmem:[#allocation2 + $0x168] sm:$0xff]
    %v368 = vld [vmem:[#allocation2 + $0x170] sm:$0xff]
    %v369 = vld [vmem:[#allocation2 + $0x178] sm:$0xff]
    %v370 = vld [vmem:[#allocation2 + $0x180] sm:$0xff]
    %v371 = vld [vmem:[#allocation2 + $0x188] sm:$0xff]
    %v372 = vld [vmem:[#allocation2 + $0x190] sm:$0xff]
    %v373 = vld [vmem:[#allocation2 + $0x198] sm:$0xff]
    %v374 = vld [vmem:[#allocation2 + $0x1a0] sm:$0xff]
    %v375 = vld [vmem:[#allocation2 + $0x1a8] sm:$0xff]
    %v376 = vld [vmem:[#allocation2 + $0x1b0] sm:$0xff]
    %v377 = vld [vmem:[#allocation2 + $0x1b8] sm:$0xff]
    %v378 = vld [vmem:[#allocation2 + $0x1c0] sm:$0xff]
    %v379 = vld [vmem:[#allocation2 + $0x1c8] sm:$0xff]
    %v380 = vld [vmem:[#allocation2 + $0x1d0] sm:$0xff]
    %v381 = vld [vmem:[#allocation2 + $0x1d8] sm:$0xff]
    %v382 = vld [vmem:[#allocation2 + $0x1e0] sm:$0xff]
    %v383 = vld [vmem:[#allocation2 + $0x1e8] sm:$0xff]
    %v384 = vld [vmem:[#allocation2 + $0x1f0] sm:$0xff]
    %v385 = vld [vmem:[#allocation2 + $0x1f8] sm:$0xff]
    %v386 = vld [vmem:[#allocation2 + $0x200] sm:$0xff]
    %v387 = vld [vmem:[#allocation2 + $0x208] sm:$0xff]
    %v388 = vld [vmem:[#allocation2 + $0x210] sm:$0xff]
    %v389 = vld [vmem:[#allocation2 + $0x218] sm:$0xff]
    %v390 = vld [vmem:[#allocation2 + $0x220] sm:$0xff]
    %v391 = vld [vmem:[#allocation2 + $0x228] sm:$0xff]
    %v392 = vld [vmem:[#allocation2 + $0x230] sm:$0xff]
    %v393 = vld [vmem:[#allocation2 + $0x238] sm:$0xff]
    %v394 = vld [vmem:[#allocation2 + $0x240] sm:$0xff]
    %v395 = vld [vmem:[#allocation2 + $0x248] sm:$0xff]
    %v396 = vld [vmem:[#allocation2 + $0x250] sm:$0xff]
    %v397 = vld [vmem:[#allocation2 + $0x258] sm:$0xff]
    %v398 = vld [vmem:[#allocation2 + $0x260] sm:$0xff]
    %v399 = vld [vmem:[#allocation2 + $0x268] sm:$0xff]
    %v400 = vld [vmem:[#allocation2 + $0x270] sm:$0xff]
    %v401 = vld [vmem:[#allocation2 + $0x278] sm:$0xff]
    %v402 = vld [vmem:[#allocation2 + $0x280] sm:$0xff]
    %v403 = vld [vmem:[#allocation2 + $0x288] sm:$0xff]
    %v404 = vld [vmem:[#allocation2 + $0x290] sm:$0xff]
    %v405 = vld [vmem:[#allocation2 + $0x298] sm:$0xff]
    %v406 = vld [vmem:[#allocation2 + $0x2a0] sm:$0xff]
    %v407 = vld [vmem:[#allocation2 + $0x2a8] sm:$0xff]
    %v408 = vld [vmem:[#allocation2 + $0x2b0] sm:$0xff]
    %v409 = vld [vmem:[#allocation2 + $0x2b8] sm:$0xff]
    %v410 = vld [vmem:[#allocation2 + $0x2c0] sm:$0xff]
    %v411 = vld [vmem:[#allocation2 + $0x2c8] sm:$0xff]
    %v412 = vld [vmem:[#allocation2 + $0x2d0] sm:$0xff]
    %v413 = vld [vmem:[#allocation2 + $0x2d8] sm:$0xff]
    %v414 = vld [vmem:[#allocation2 + $0x2e0] sm:$0xff]
    %v415 = vld [vmem:[#allocation2 + $0x2e8] sm:$0xff]
    %v416 = vld [vmem:[#allocation2 + $0x2f0] sm:$0xff]
    %v417 = vld [vmem:[#allocation2 + $0x2f8] sm:$0xff]
    %v418 = vld [vmem:[#allocation2 + $0x300] sm:$0xff]
    %v419 = vld [vmem:[#allocation2 + $0x308] sm:$0xff]
    %v420 = vld [vmem:[#allocation2 + $0x310] sm:$0xff]
    %v421 = vld [vmem:[#allocation2 + $0x318] sm:$0xff]
    %v422 = vld [vmem:[#allocation2 + $0x320] sm:$0xff]
    %v423 = vld [vmem:[#allocation2 + $0x328] sm:$0xff]
    %v424 = vld [vmem:[#allocation2 + $0x330] sm:$0xff]
    %v425 = vld [vmem:[#allocation2 + $0x338] sm:$0xff]
    %v426 = vld [vmem:[#allocation2 + $0x340] sm:$0xff]
    %v427 = vld [vmem:[#allocation2 + $0x348] sm:$0xff]
    %v428 = vld [vmem:[#allocation2 + $0x350] sm:$0xff]
    %v429 = vld [vmem:[#allocation2 + $0x358] sm:$0xff]
    %v430 = vld [vmem:[#allocation2 + $0x360] sm:$0xff]
    %v431 = vld [vmem:[#allocation2 + $0x368] sm:$0xff]
    %v432 = vld [vmem:[#allocation2 + $0x370] sm:$0xff]
    %v433 = vld [vmem:[#allocation2 + $0x378] sm:$0xff]
    %v434 = vld [vmem:[#allocation2 + $0x380] sm:$0xff]
    %v435 = vld [vmem:[#allocation2 + $0x388] sm:$0xff]
    %v436 = vld [vmem:[#allocation2 + $0x390] sm:$0xff]
    %v437 = vld [vmem:[#allocation2 + $0x398] sm:$0xff]
    %v438 = vld [vmem:[#allocation2 + $0x3a0] sm:$0xff]
    %v439 = vld [vmem:[#allocation2 + $0x3a8] sm:$0xff]
    %v440 = vld [vmem:[#allocation2 + $0x3b0] sm:$0xff]
    %v441 = vld [vmem:[#allocation2 + $0x3b8] sm:$0xff]
    %v442 = vld [vmem:[#allocation2 + $0x3c0] sm:$0xff]
    %v443 = vld [vmem:[#allocation2 + $0x3c8] sm:$0xff]
    %v444 = vld [vmem:[#allocation2 + $0x3d0] sm:$0xff]
    %v445 = vld [vmem:[#allocation2 + $0x3d8] sm:$0xff]
    %v446 = vld [vmem:[#allocation2 + $0x3e0] sm:$0xff]
    %v447 = vld [vmem:[#allocation2 + $0x3e8] sm:$0xff]
    %v448 = vld [vmem:[#allocation2 + $0x3f0] sm:$0xff]
    %v449 = vld [vmem:[#allocation2 + $0x3f8] sm:$0xff]
    %v450 = vld [vmem:[#allocation2 + $0x400] sm:$0xff]
    %v451 = vld [vmem:[#allocation2 + $0x408] sm:$0xff]
    %v452 = vld [vmem:[#allocation2 + $0x410] sm:$0xff]
    %v453 = vld [vmem:[#allocation2 + $0x418] sm:$0xff]
    %v454 = vld [vmem:[#allocation2 + $0x420] sm:$0xff]
    %v455 = vld [vmem:[#allocation2 + $0x428] sm:$0xff]
    %v456 = vld [vmem:[#allocation2 + $0x430] sm:$0xff]
    %v457 = vld [vmem:[#allocation2 + $0x438] sm:$0xff]
    %v458 = vld [vmem:[#allocation2 + $0x440] sm:$0xff]
    %v459 = vld [vmem:[#allocation2 + $0x448] sm:$0xff]
    %v460 = vld [vmem:[#allocation2 + $0x450] sm:$0xff]
    %v461 = vld [vmem:[#allocation2 + $0x458] sm:$0xff]
    %v462 = vld [vmem:[#allocation2 + $0x460] sm:$0xff]
    %v463 = vld [vmem:[#allocation2 + $0x468] sm:$0xff]
    %v464 = vld [vmem:[#allocation2 + $0x470] sm:$0xff]
    %v465 = vld [vmem:[#allocation2 + $0x478] sm:$0xff]
    %v466 = vld [vmem:[#allocation2 + $0x480] sm:$0xff]
    %v467 = vld [vmem:[#allocation2 + $0x488] sm:$0xff]
    %v468 = vld [vmem:[#allocation2 + $0x490] sm:$0xff]
    %v469 = vld [vmem:[#allocation2 + $0x498] sm:$0xff]
    %v470 = vld [vmem:[#allocation2 + $0x4a0] sm:$0xff]
    %v471 = vld [vmem:[#allocation2 + $0x4a8] sm:$0xff]
    %v472 = vld [vmem:[#allocation2 + $0x4b0] sm:$0xff]
    %v473 = vld [vmem:[#allocation2 + $0x4b8] sm:$0xff]
    %v474 = vld [vmem:[#allocation2 + $0x4c0] sm:$0xff]
    %v475 = vld [vmem:[#allocation2 + $0x4c8] sm:$0xff]
    %v476 = vld [vmem:[#allocation2 + $0x4d0] sm:$0xff]
    %v477 = vld [vmem:[#allocation2 + $0x4d8] sm:$0xff]
    %v478 = vld [vmem:[#allocation2 + $0x4e0] sm:$0xff]
    %v479 = vld [vmem:[#allocation2 + $0x4e8] sm:$0xff]
    %v480 = vld [vmem:[#allocation2 + $0x4f0] sm:$0xff]
    %v481 = vld [vmem:[#allocation2 + $0x4f8] sm:$0xff]
    %v482 = vld [vmem:[#allocation2 + $0x500] sm:$0xff]
    %v483 = vld [vmem:[#allocation2 + $0x508] sm:$0xff]
    %v484 = vld [vmem:[#allocation2 + $0x510] sm:$0xff]
    %v485 = vld [vmem:[#allocation2 + $0x518] sm:$0xff]
    %v486 = vld [vmem:[#allocation2 + $0x520] sm:$0xff]
    %v487 = vld [vmem:[#allocation2 + $0x528] sm:$0xff]
    %v488 = vld [vmem:[#allocation2 + $0x530] sm:$0xff]
    %v489 = vld [vmem:[#allocation2 + $0x538] sm:$0xff]
    %v490 = vld [vmem:[#allocation2 + $0x540] sm:$0xff]
    %v491 = vld [vmem:[#allocation2 + $0x548] sm:$0xff]
    %v492 = vld [vmem:[#allocation2 + $0x550] sm:$0xff]
    %v493 = vld [vmem:[#allocation2 + $0x558] sm:$0xff]
    %v494 = vld [vmem:[#allocation2 + $0x560] sm:$0xff]
    %v495 = vld [vmem:[#allocation2 + $0x568] sm:$0xff]
    %v496 = vld [vmem:[#allocation2 + $0x570] sm:$0xff]
    %v497 = vld [vmem:[#allocation2 + $0x578] sm:$0xff]
    %v498 = vld [vmem:[#allocation2 + $0x580] sm:$0xff]
    %v499 = vld [vmem:[#allocation2 + $0x588] sm:$0xff]
    %v500 = vld [vmem:[#allocation2 + $0x590] sm:$0xff]
    %v501 = vld [vmem:[#allocation2 + $0x598] sm:$0xff]
    %v502 = vld [vmem:[#allocation2 + $0x5a0] sm:$0xff]
    %v503 = vld [vmem:[#allocation2 + $0x5a8] sm:$0xff]
    %v504 = vld [vmem:[#allocation2 + $0x5b0] sm:$0xff]
    %v505 = vld [vmem:[#allocation2 + $0x5b8] sm:$0xff]
    %v506 = vld [vmem:[#allocation2 + $0x5c0] sm:$0xff]
    %v507 = vld [vmem:[#allocation2 + $0x5c8] sm:$0xff]
    %v508 = vld [vmem:[#allocation2 + $0x5d0] sm:$0xff]
    %v509 = vld [vmem:[#allocation2 + $0x5d8] sm:$0xff]
    %v510 = vld [vmem:[#allocation2 + $0x5e0] sm:$0xff]
    %v511 = vld [vmem:[#allocation2 + $0x5e8] sm:$0xff]
    %v512 = vld [vmem:[#allocation2 + $0x5f0] sm:$0xff]
    %v513 = vld [vmem:[#allocation2 + $0x5f8] sm:$0xff]
    %v514 = vld [vmem:[#allocation2 + $0x600] sm:$0xff]
    %v515 = vld [vmem:[#allocation2 + $0x608] sm:$0xff]
    %v516 = vld [vmem:[#allocation2 + $0x610] sm:$0xff]
    %v517 = vld [vmem:[#allocation2 + $0x618] sm:$0xff]
    %v518 = vld [vmem:[#allocation2 + $0x620] sm:$0xff]
    %v519 = vld [vmem:[#allocation2 + $0x628] sm:$0xff]
    %v520 = vld [vmem:[#allocation2 + $0x630] sm:$0xff]
    %v521 = vld [vmem:[#allocation2 + $0x638] sm:$0xff]
    %v522 = vld [vmem:[#allocation2 + $0x640] sm:$0xff]
    %v523 = vld [vmem:[#allocation2 + $0x648] sm:$0xff]
    %v524 = vld [vmem:[#allocation2 + $0x650] sm:$0xff]
    %v525 = vld [vmem:[#allocation2 + $0x658] sm:$0xff]
    %v526 = vld [vmem:[#allocation2 + $0x660] sm:$0xff]
    %v527 = vld [vmem:[#allocation2 + $0x668] sm:$0xff]
    %v528 = vld [vmem:[#allocation2 + $0x670] sm:$0xff]
    %v529 = vld [vmem:[#allocation2 + $0x678] sm:$0xff]
    %v530 = vld [vmem:[#allocation2 + $0x680] sm:$0xff]
    %v531 = vld [vmem:[#allocation2 + $0x688] sm:$0xff]
    %v532 = vld [vmem:[#allocation2 + $0x690] sm:$0xff]
    %v533 = vld [vmem:[#allocation2 + $0x698] sm:$0xff]
    %v534 = vld [vmem:[#allocation2 + $0x6a0] sm:$0xff]
    %v535 = vld [vmem:[#allocation2 + $0x6a8] sm:$0xff]
    %v536 = vld [vmem:[#allocation2 + $0x6b0] sm:$0xff]
    %v537 = vld [vmem:[#allocation2 + $0x6b8] sm:$0xff]
    %v538 = vld [vmem:[#allocation2 + $0x6c0] sm:$0xff]
    %v539 = vld [vmem:[#allocation2 + $0x6c8] sm:$0xff]
    %v540 = vld [vmem:[#allocation2 + $0x6d0] sm:$0xff]
    %v541 = vld [vmem:[#allocation2 + $0x6d8] sm:$0xff]
    %v542 = vld [vmem:[#allocation2 + $0x6e0] sm:$0xff]
    %v543 = vld [vmem:[#allocation2 + $0x6e8] sm:$0xff]
    %v544 = vld [vmem:[#allocation2 + $0x6f0] sm:$0xff]
    %v545 = vld [vmem:[#allocation2 + $0x6f8] sm:$0xff]
    %v546 = vld [vmem:[#allocation2 + $0x700] sm:$0xff]
    %v547 = vld [vmem:[#allocation2 + $0x708] sm:$0xff]
    %v548 = vld [vmem:[#allocation2 + $0x710] sm:$0xff]
    %v549 = vld [vmem:[#allocation2 + $0x718] sm:$0xff]
    %v550 = vld [vmem:[#allocation2 + $0x720] sm:$0xff]
    %v551 = vld [vmem:[#allocation2 + $0x728] sm:$0xff]
    %v552 = vld [vmem:[#allocation2 + $0x730] sm:$0xff]
    %v553 = vld [vmem:[#allocation2 + $0x738] sm:$0xff]
    %v554 = vld [vmem:[#allocation2 + $0x740] sm:$0xff]
    %v555 = vld [vmem:[#allocation2 + $0x748] sm:$0xff]
    %v556 = vld [vmem:[#allocation2 + $0x750] sm:$0xff]
    %v557 = vld [vmem:[#allocation2 + $0x758] sm:$0xff]
    %v558 = vld [vmem:[#allocation2 + $0x760] sm:$0xff]
    %v559 = vld [vmem:[#allocation2 + $0x768] sm:$0xff]
    %v560 = vld [vmem:[#allocation2 + $0x770] sm:$0xff]
    %v561 = vld [vmem:[#allocation2 + $0x778] sm:$0xff]
    %v562 = vld [vmem:[#allocation2 + $0x780] sm:$0xff]
    %v563 = vld [vmem:[#allocation2 + $0x788] sm:$0xff]
    %v564 = vld [vmem:[#allocation2 + $0x790] sm:$0xff]
    %v565 = vld [vmem:[#allocation2 + $0x798] sm:$0xff]
    %v566 = vld [vmem:[#allocation2 + $0x7a0] sm:$0xff]
    %v567 = vld [vmem:[#allocation2 + $0x7a8] sm:$0xff]
    %v568 = vld [vmem:[#allocation2 + $0x7b0] sm:$0xff]
    %v569 = vld [vmem:[#allocation2 + $0x7b8] sm:$0xff]
    %v570 = vld [vmem:[#allocation2 + $0x7c0] sm:$0xff]
    %v571 = vld [vmem:[#allocation2 + $0x7c8] sm:$0xff]
    %v572 = vld [vmem:[#allocation2 + $0x7d0] sm:$0xff]
    %v573 = vld [vmem:[#allocation2 + $0x7d8] sm:$0xff]
    %v574 = vld [vmem:[#allocation2 + $0x7e0] sm:$0xff]
    %v575 = vld [vmem:[#allocation2 + $0x7e8] sm:$0xff]
    %v576 = vld [vmem:[#allocation2 + $0x7f0] sm:$0xff]
    %v577 = vld [vmem:[#allocation2 + $0x7f8] sm:$0xff]
    %v578 = vld [vmem:[#allocation2 + $0x800] sm:$0xff]
    %v579 = vld [vmem:[#allocation2 + $0x808] sm:$0xff]
    %v580 = vld [vmem:[#allocation2 + $0x810] sm:$0xff]
    %v581 = vld [vmem:[#allocation2 + $0x818] sm:$0xff]
    %v582 = vld [vmem:[#allocation2 + $0x820] sm:$0xff]
    %v583 = vld [vmem:[#allocation2 + $0x828] sm:$0xff]
    %v584 = vld [vmem:[#allocation2 + $0x830] sm:$0xff]
    %v585 = vld [vmem:[#allocation2 + $0x838] sm:$0xff]
    %v586 = vld [vmem:[#allocation2 + $0x840] sm:$0xff]
    %v587 = vld [vmem:[#allocation2 + $0x848] sm:$0xff]
    %v588 = vld [vmem:[#allocation2 + $0x850] sm:$0xff]
    %v589 = vld [vmem:[#allocation2 + $0x858] sm:$0xff]
    %v590 = vld [vmem:[#allocation2 + $0x860] sm:$0xff]
    %v591 = vld [vmem:[#allocation2 + $0x868] sm:$0xff]
    %v592 = vld [vmem:[#allocation2 + $0x870] sm:$0xff]
    %v593 = vld [vmem:[#allocation2 + $0x878] sm:$0xff]
    %v594 = vld [vmem:[#allocation2 + $0x880] sm:$0xff]
    %v595 = vld [vmem:[#allocation2 + $0x888] sm:$0xff]
    %v596 = vld [vmem:[#allocation2 + $0x890] sm:$0xff]
    %v597 = vld [vmem:[#allocation2 + $0x898] sm:$0xff]
    %v598 = vld [vmem:[#allocation2 + $0x8a0] sm:$0xff]
    %v599 = vld [vmem:[#allocation2 + $0x8a8] sm:$0xff]
    %v600 = vld [vmem:[#allocation2 + $0x8b0] sm:$0xff]
    %v601 = vld [vmem:[#allocation2 + $0x8b8] sm:$0xff]
    %v602 = vld [vmem:[#allocation2 + $0x8c0] sm:$0xff]
    %v603 = vld [vmem:[#allocation2 + $0x8c8] sm:$0xff]
    %v604 = vld [vmem:[#allocation2 + $0x8d0] sm:$0xff]
    %v605 = vld [vmem:[#allocation2 + $0x8d8] sm:$0xff]
    %v606 = vld [vmem:[#allocation2 + $0x8e0] sm:$0xff]
    %v607 = vld [vmem:[#allocation2 + $0x8e8] sm:$0xff]
    %v608 = vld [vmem:[#allocation2 + $0x8f0] sm:$0xff]
    %v609 = vld [vmem:[#allocation2 + $0x8f8] sm:$0xff]
    %v610 = vld [vmem:[#allocation2 + $0x900] sm:$0xff]
    %v611 = vld [vmem:[#allocation2 + $0x908] sm:$0xff]
    %v612 = vld [vmem:[#allocation2 + $0x910] sm:$0xff]
    %v613 = vld [vmem:[#allocation2 + $0x918] sm:$0xff]
    %v614 = vld [vmem:[#allocation2 + $0x920] sm:$0xff]
    %v615 = vld [vmem:[#allocation2 + $0x928] sm:$0xff]
    %v616 = vld [vmem:[#allocation2 + $0x930] sm:$0xff]
    %v617 = vld [vmem:[#allocation2 + $0x938] sm:$0xff]
    %v618 = vld [vmem:[#allocation2 + $0x940] sm:$0xff]
    %v619 = vld [vmem:[#allocation2 + $0x948] sm:$0xff]
    %v620 = vld [vmem:[#allocation2 + $0x950] sm:$0xff]
    %v621 = vld [vmem:[#allocation2 + $0x958] sm:$0xff]
    %v622 = vld [vmem:[#allocation2 + $0x960] sm:$0xff]
    %v623 = vld [vmem:[#allocation2 + $0x968] sm:$0xff]
    %v624 = vld [vmem:[#allocation2 + $0x970] sm:$0xff]
    %v625 = vld [vmem:[#allocation2 + $0x978] sm:$0xff]
    %v626 = vld [vmem:[#allocation2 + $0x980] sm:$0xff]
    %v627 = vld [vmem:[#allocation2 + $0x988] sm:$0xff]
    %v628 = vld [vmem:[#allocation2 + $0x990] sm:$0xff]
    %v629 = vld [vmem:[#allocation2 + $0x998] sm:$0xff]
    %v630 = vld [vmem:[#allocation2 + $0x9a0] sm:$0xff]
    %v631 = vld [vmem:[#allocation2 + $0x9a8] sm:$0xff]
    %v632 = vld [vmem:[#allocation2 + $0x9b0] sm:$0xff]
    %v633 = vld [vmem:[#allocation2 + $0x9b8] sm:$0xff]
    %v634 = vld [vmem:[#allocation2 + $0x9c0] sm:$0xff]
    %v635 = vld [vmem:[#allocation2 + $0x9c8] sm:$0xff]
    %v636 = vld [vmem:[#allocation2 + $0x9d0] sm:$0xff]
    %v637 = vld [vmem:[#allocation2 + $0x9d8] sm:$0xff]
    %v638 = vld [vmem:[#allocation2 + $0x9e0] sm:$0xff]
    %v639 = vld [vmem:[#allocation2 + $0x9e8] sm:$0xff]
    %v640 = vld [vmem:[#allocation2 + $0x9f0] sm:$0xff]
    %v641 = vld [vmem:[#allocation2 + $0x9f8] sm:$0xff]
    %v642 = vld [vmem:[#allocation2 + $0xa00] sm:$0xff]
    %v643 = vld [vmem:[#allocation2 + $0xa08] sm:$0xff]
    %v644 = vld [vmem:[#allocation2 + $0xa10] sm:$0xff]
    %v645 = vld [vmem:[#allocation2 + $0xa18] sm:$0xff]
    %v646 = vld [vmem:[#allocation2 + $0xa20] sm:$0xff]
    %v647 = vld [vmem:[#allocation2 + $0xa28] sm:$0xff]
    %v648 = vld [vmem:[#allocation2 + $0xa30] sm:$0xff]
    %v649 = vld [vmem:[#allocation2 + $0xa38] sm:$0xff]
    %v650 = vld [vmem:[#allocation2 + $0xa40] sm:$0xff]
    %v651 = vld [vmem:[#allocation2 + $0xa48] sm:$0xff]
    %v652 = vld [vmem:[#allocation2 + $0xa50] sm:$0xff]
    %v653 = vld [vmem:[#allocation2 + $0xa58] sm:$0xff]
    %v654 = vld [vmem:[#allocation2 + $0xa60] sm:$0xff]
    %v655 = vld [vmem:[#allocation2 + $0xa68] sm:$0xff]
    %v656 = vld [vmem:[#allocation2 + $0xa70] sm:$0xff]
    %v657 = vld [vmem:[#allocation2 + $0xa78] sm:$0xff]
    %v658 = vld [vmem:[#allocation2 + $0xa80] sm:$0xff]
    %v659 = vld [vmem:[#allocation2 + $0xa88] sm:$0xff]
    %v660 = vld [vmem:[#allocation2 + $0xa90] sm:$0xff]
    %v661 = vld [vmem:[#allocation2 + $0xa98] sm:$0xff]
    %v662 = vld [vmem:[#allocation2 + $0xaa0] sm:$0xff]
    %v663 = vld [vmem:[#allocation2 + $0xaa8] sm:$0xff]
    %v664 = vld [vmem:[#allocation2 + $0xab0] sm:$0xff]
    %v665 = vld [vmem:[#allocation2 + $0xab8] sm:$0xff]
    %v666 = vld [vmem:[#allocation2 + $0xac0] sm:$0xff]
    %v667 = vld [vmem:[#allocation2 + $0xac8] sm:$0xff]
    %v668 = vld [vmem:[#allocation2 + $0xad0] sm:$0xff]
    %v669 = vld [vmem:[#allocation2 + $0xad8] sm:$0xff]
    %v670 = vld [vmem:[#allocation2 + $0xae0] sm:$0xff]
    %v671 = vld [vmem:[#allocation2 + $0xae8] sm:$0xff]
    %v672 = vld [vmem:[#allocation2 + $0xaf0] sm:$0xff]
    %v673 = vld [vmem:[#allocation2 + $0xaf8] sm:$0xff]
    %v674 = vld [vmem:[#allocation2 + $0xb00] sm:$0xff]
    %v675 = vld [vmem:[#allocation2 + $0xb08] sm:$0xff]
    %v676 = vld [vmem:[#allocation2 + $0xb10] sm:$0xff]
    %v677 = vld [vmem:[#allocation2 + $0xb18] sm:$0xff]
    %v678 = vld [vmem:[#allocation2 + $0xb20] sm:$0xff]
    %v679 = vld [vmem:[#allocation2 + $0xb28] sm:$0xff]
    %v680 = vld [vmem:[#allocation2 + $0xb30] sm:$0xff]
    %v681 = vld [vmem:[#allocation2 + $0xb38] sm:$0xff]
    %v682 = vld [vmem:[#allocation2 + $0xb40] sm:$0xff]
    %v683 = vld [vmem:[#allocation2 + $0xb48] sm:$0xff]
    %v684 = vld [vmem:[#allocation2 + $0xb50] sm:$0xff]
    %v685 = vld [vmem:[#allocation2 + $0xb58] sm:$0xff]
    %v686 = vld [vmem:[#allocation2 + $0xb60] sm:$0xff]
    %v687 = vld [vmem:[#allocation2 + $0xb68] sm:$0xff]
    %v688 = vld [vmem:[#allocation2 + $0xb70] sm:$0xff]
    %v689 = vld [vmem:[#allocation2 + $0xb78] sm:$0xff]
    %v690 = vld [vmem:[#allocation2 + $0xb80] sm:$0xff]
    %v691 = vld [vmem:[#allocation2 + $0xb88] sm:$0xff]
    %v692 = vld [vmem:[#allocation2 + $0xb90] sm:$0xff]
    %v693 = vld [vmem:[#allocation2 + $0xb98] sm:$0xff]
    %v694 = vld [vmem:[#allocation2 + $0xba0] sm:$0xff]
    %v695 = vld [vmem:[#allocation2 + $0xba8] sm:$0xff]
    %v696 = vld [vmem:[#allocation2 + $0xbb0] sm:$0xff]
    %v697 = vld [vmem:[#allocation2 + $0xbb8] sm:$0xff]
    %v698 = vld [vmem:[#allocation2 + $0xbc0] sm:$0xff]
    %v699 = vld [vmem:[#allocation2 + $0xbc8] sm:$0xff]
    %v700 = vld [vmem:[#allocation2 + $0xbd0] sm:$0xff]
    %v701 = vld [vmem:[#allocation2 + $0xbd8] sm:$0xff]
    %v702 = vld [vmem:[#allocation2 + $0xbe0] sm:$0xff]
    %v703 = vld [vmem:[#allocation2 + $0xbe8] sm:$0xff]
    %v704 = vld [vmem:[#allocation2 + $0xbf0] sm:$0xff]
    %v705 = vld [vmem:[#allocation2 + $0xbf8] sm:$0xff]
    %v706 = vld [vmem:[#allocation2 + $0xc00] sm:$0xff]
    %v707 = vld [vmem:[#allocation2 + $0xc08] sm:$0xff]
    %v708 = vld [vmem:[#allocation2 + $0xc10] sm:$0xff]
    %v709 = vld [vmem:[#allocation2 + $0xc18] sm:$0xff]
    %v710 = vld [vmem:[#allocation2 + $0xc20] sm:$0xff]
    %v711 = vld [vmem:[#allocation2 + $0xc28] sm:$0xff]
    %v712 = vld [vmem:[#allocation2 + $0xc30] sm:$0xff]
    %v713 = vld [vmem:[#allocation2 + $0xc38] sm:$0xff]
    %v714 = vld [vmem:[#allocation2 + $0xc40] sm:$0xff]
    %v715 = vld [vmem:[#allocation2 + $0xc48] sm:$0xff]
    %v716 = vld [vmem:[#allocation2 + $0xc50] sm:$0xff]
    %v717 = vld [vmem:[#allocation2 + $0xc58] sm:$0xff]
    %v718 = vld [vmem:[#allocation2 + $0xc60] sm:$0xff]
    %v719 = vld [vmem:[#allocation2 + $0xc68] sm:$0xff]
    %v720 = vld [vmem:[#allocation2 + $0xc70] sm:$0xff]
    %v721 = vld [vmem:[#allocation2 + $0xc78] sm:$0xff]
    %v722 = vld [vmem:[#allocation2 + $0xc80] sm:$0xff]
    %v723 = vld [vmem:[#allocation2 + $0xc88] sm:$0xff]
    %v724 = vld [vmem:[#allocation2 + $0xc90] sm:$0xff]
    %v725 = vld [vmem:[#allocation2 + $0xc98] sm:$0xff]
    %v726 = vld [vmem:[#allocation2 + $0xca0] sm:$0xff]
    %v727 = vld [vmem:[#allocation2 + $0xca8] sm:$0xff]
    %v728 = vld [vmem:[#allocation2 + $0xcb0] sm:$0xff]
    %v729 = vld [vmem:[#allocation2 + $0xcb8] sm:$0xff]
    %v730 = vld [vmem:[#allocation2 + $0xcc0] sm:$0xff]
    %v731 = vld [vmem:[#allocation2 + $0xcc8] sm:$0xff]
    %v732 = vld [vmem:[#allocation2 + $0xcd0] sm:$0xff]
    %v733 = vld [vmem:[#allocation2 + $0xcd8] sm:$0xff]
    %v734 = vld [vmem:[#allocation2 + $0xce0] sm:$0xff]
    %v735 = vld [vmem:[#allocation2 + $0xce8] sm:$0xff]
    %v736 = vld [vmem:[#allocation2 + $0xcf0] sm:$0xff]
    %v737 = vld [vmem:[#allocation2 + $0xcf8] sm:$0xff]
    %v738 = vld [vmem:[#allocation2 + $0xd00] sm:$0xff]
    %v739 = vld [vmem:[#allocation2 + $0xd08] sm:$0xff]
    %v740 = vld [vmem:[#allocation2 + $0xd10] sm:$0xff]
    %v741 = vld [vmem:[#allocation2 + $0xd18] sm:$0xff]
    %v742 = vld [vmem:[#allocation2 + $0xd20] sm:$0xff]
    %v743 = vld [vmem:[#allocation2 + $0xd28] sm:$0xff]
    %v744 = vld [vmem:[#allocation2 + $0xd30] sm:$0xff]
    %v745 = vld [vmem:[#allocation2 + $0xd38] sm:$0xff]
    %v746 = vld [vmem:[#allocation2 + $0xd40] sm:$0xff]
    %v747 = vld [vmem:[#allocation2 + $0xd48] sm:$0xff]
    %v748 = vld [vmem:[#allocation2 + $0xd50] sm:$0xff]
    %v749 = vld [vmem:[#allocation2 + $0xd58] sm:$0xff]
    %v750 = vld [vmem:[#allocation2 + $0xd60] sm:$0xff]
    %v751 = vld [vmem:[#allocation2 + $0xd68] sm:$0xff]
    %v752 = vld [vmem:[#allocation2 + $0xd70] sm:$0xff]
    %v753 = vld [vmem:[#allocation2 + $0xd78] sm:$0xff]
    %v754 = vld [vmem:[#allocation2 + $0xd80] sm:$0xff]
    %v755 = vld [vmem:[#allocation2 + $0xd88] sm:$0xff]
    %v756 = vld [vmem:[#allocation2 + $0xd90] sm:$0xff]
    %v757 = vld [vmem:[#allocation2 + $0xd98] sm:$0xff]
    %v758 = vld [vmem:[#allocation2 + $0xda0] sm:$0xff]
    %v759 = vld [vmem:[#allocation2 + $0xda8] sm:$0xff]
    %v760 = vld [vmem:[#allocation2 + $0xdb0] sm:$0xff]
    %v761 = vld [vmem:[#allocation2 + $0xdb8] sm:$0xff]
    %v762 = vld [vmem:[#allocation2 + $0xdc0] sm:$0xff]
    %v763 = vld [vmem:[#allocation2 + $0xdc8] sm:$0xff]
    %v764 = vld [vmem:[#allocation2 + $0xdd0] sm:$0xff]
    %v765 = vld [vmem:[#allocation2 + $0xdd8] sm:$0xff]
    %v766 = vld [vmem:[#allocation2 + $0xde0] sm:$0xff]
    %v767 = vld [vmem:[#allocation2 + $0xde8] sm:$0xff]
    %v768 = vld [vmem:[#allocation2 + $0xdf0] sm:$0xff]
    %v769 = vld [vmem:[#allocation2 + $0xdf8] sm:$0xff]
    %v770 = vld [vmem:[#allocation2 + $0xe00] sm:$0xff]
    %v771 = vld [vmem:[#allocation2 + $0xe08] sm:$0xff]
    %v772 = vld [vmem:[#allocation2 + $0xe10] sm:$0xff]
    %v773 = vld [vmem:[#allocation2 + $0xe18] sm:$0xff]
    %v774 = vld [vmem:[#allocation2 + $0xe20] sm:$0xff]
    %v775 = vld [vmem:[#allocation2 + $0xe28] sm:$0xff]
    %v776 = vld [vmem:[#allocation2 + $0xe30] sm:$0xff]
    %v777 = vld [vmem:[#allocation2 + $0xe38] sm:$0xff]
    %v778 = vld [vmem:[#allocation2 + $0xe40] sm:$0xff]
    %v779 = vld [vmem:[#allocation2 + $0xe48] sm:$0xff]
    %v780 = vld [vmem:[#allocation2 + $0xe50] sm:$0xff]
    %v781 = vld [vmem:[#allocation2 + $0xe58] sm:$0xff]
    %v782 = vld [vmem:[#allocation2 + $0xe60] sm:$0xff]
    %v783 = vld [vmem:[#allocation2 + $0xe68] sm:$0xff]
    %v784 = vld [vmem:[#allocation2 + $0xe70] sm:$0xff]
    %v785 = vld [vmem:[#allocation2 + $0xe78] sm:$0xff]
    %v786 = vld [vmem:[#allocation2 + $0xe80] sm:$0xff]
    %v787 = vld [vmem:[#allocation2 + $0xe88] sm:$0xff]
    %v788 = vld [vmem:[#allocation2 + $0xe90] sm:$0xff]
    %v789 = vld [vmem:[#allocation2 + $0xe98] sm:$0xff]
    %v790 = vld [vmem:[#allocation2 + $0xea0] sm:$0xff]
    %v791 = vld [vmem:[#allocation2 + $0xea8] sm:$0xff]
    %v792 = vld [vmem:[#allocation2 + $0xeb0] sm:$0xff]
    %v793 = vld [vmem:[#allocation2 + $0xeb8] sm:$0xff]
    %v794 = vld [vmem:[#allocation2 + $0xec0] sm:$0xff]
    %v795 = vld [vmem:[#allocation2 + $0xec8] sm:$0xff]
    %v796 = vld [vmem:[#allocation2 + $0xed0] sm:$0xff]
    %v797 = vld [vmem:[#allocation2 + $0xed8] sm:$0xff]
    %v798 = vld [vmem:[#allocation2 + $0xee0] sm:$0xff]
    %v799 = vld [vmem:[#allocation2 + $0xee8] sm:$0xff]
    %v800 = vld [vmem:[#allocation2 + $0xef0] sm:$0xff]
    %v801 = vld [vmem:[#allocation2 + $0xef8] sm:$0xff]
    %v802 = vld [vmem:[#allocation2 + $0xf00] sm:$0xff]
    %v803 = vld [vmem:[#allocation2 + $0xf08] sm:$0xff]
    %v804 = vld [vmem:[#allocation2 + $0xf10] sm:$0xff]
    %v805 = vld [vmem:[#allocation2 + $0xf18] sm:$0xff]
    %v806 = vld [vmem:[#allocation2 + $0xf20] sm:$0xff]
    %v807 = vld [vmem:[#allocation2 + $0xf28] sm:$0xff]
    %v808 = vld [vmem:[#allocation2 + $0xf30] sm:$0xff]
    %v809 = vld [vmem:[#allocation2 + $0xf38] sm:$0xff]
    %v810 = vld [vmem:[#allocation2 + $0xf40] sm:$0xff]
    %v811 = vld [vmem:[#allocation2 + $0xf48] sm:$0xff]
    %v812 = vld [vmem:[#allocation2 + $0xf50] sm:$0xff]
    %v813 = vld [vmem:[#allocation2 + $0xf58] sm:$0xff]
    %v814 = vld [vmem:[#allocation2 + $0xf60] sm:$0xff]
    %v815 = vld [vmem:[#allocation2 + $0xf68] sm:$0xff]
    %v816 = vld [vmem:[#allocation2 + $0xf70] sm:$0xff]
    %v817 = vld [vmem:[#allocation2 + $0xf78] sm:$0xff]
    %v818 = vld [vmem:[#allocation2 + $0xf80] sm:$0xff]
    %v819 = vld [vmem:[#allocation2 + $0xf88] sm:$0xff]
    %v820 = vld [vmem:[#allocation2 + $0xf90] sm:$0xff]
    %v821 = vld [vmem:[#allocation2 + $0xf98] sm:$0xff]
    %v822 = vld [vmem:[#allocation2 + $0xfa0] sm:$0xff]
    %v823 = vld [vmem:[#allocation2 + $0xfa8] sm:$0xff]
    %v824 = vld [vmem:[#allocation2 + $0xfb0] sm:$0xff]
    %v825 = vld [vmem:[#allocation2 + $0xfb8] sm:$0xff]
    %v826 = vld [vmem:[#allocation2 + $0xfc0] sm:$0xff]
    %v827 = vld [vmem:[#allocation2 + $0xfc8] sm:$0xff]
    %v828 = vld [vmem:[#allocation2 + $0xfd0] sm:$0xff]
    %v829 = vld [vmem:[#allocation2 + $0xfd8] sm:$0xff]
    %v830 = vld [vmem:[#allocation2 + $0xfe0] sm:$0xff]
    %v831 = vld [vmem:[#allocation2 + $0xfe8] sm:$0xff]
    %v832 = vld [vmem:[#allocation2 + $0xff0] sm:$0xff]
    %v833 = vld [vmem:[#allocation2 + $0xff8] sm:$0xff]
    %v834 = vld [vmem:[#allocation10] sm:$0xff]
    %v835 = vunpack.c.l.bf16 %v834
    %v836 = vunpack.c.h.bf16 %v834
    %v839 = vlaneseq
    %v840 = vshrl.u32 %v839, 7
    %v841 = vsub.s32 0, %v840
    %v842 = vrot.slane %v835, %v841
    %v843 = vlaneseq
    %v844 = vshrl.u32 %v843, 7
    %v845 = vsub.s32 2, %v844
    %v846 = vrot.slane %v835, %v845
    %v847 = vlaneseq
    %v848 = vshrl.u32 %v847, 7
    %v849 = vsub.s32 4, %v848
    %v850 = vrot.slane %v835, %v849
    %v851 = vlaneseq
    %v852 = vshrl.u32 %v851, 7
    %v853 = vsub.s32 6, %v852
    %v854 = vrot.slane %v835, %v853
    %v855 = vlaneseq
    %v856 = vshrl.u32 %v855, 7
    %v857 = vsub.s32 0, %v856
    %v858 = vrot.slane %v836, %v857
    %v859 = vlaneseq
    %v860 = vshrl.u32 %v859, 7
    %v861 = vsub.s32 2, %v860
    %v862 = vrot.slane %v836, %v861
    %v863 = vlaneseq
    %v864 = vshrl.u32 %v863, 7
    %v865 = vsub.s32 4, %v864
    %v866 = vrot.slane %v836, %v865
    %v867 = vlaneseq
    %v868 = vshrl.u32 %v867, 7
    %v869 = vsub.s32 6, %v868
    %v870 = vrot.slane %v836, %v869
    %v879 = vlaneseq
    %v880 = vshrl.u32 %v879, 7
    %v881 = vsub.s32 0, %v880
    %v882 = vrot.slane %v842, %v881
    %v883 = vlaneseq
    %v884 = vshrl.u32 %v883, 7
    %v885 = vsub.s32 0, %v884
    %v886 = vrot.slane %v846, %v885
    %v887 = vlaneseq
    %v888 = vshrl.u32 %v887, 7
    %v889 = vsub.s32 0, %v888
    %v890 = vrot.slane %v850, %v889
    %v891 = vlaneseq
    %v892 = vshrl.u32 %v891, 7
    %v893 = vsub.s32 0, %v892
    %v894 = vrot.slane %v854, %v893
    %v895 = vlaneseq
    %v896 = vshrl.u32 %v895, 7
    %v897 = vsub.s32 0, %v896
    %v898 = vrot.slane %v858, %v897
    %v899 = vlaneseq
    %v900 = vshrl.u32 %v899, 7
    %v901 = vsub.s32 0, %v900
    %v902 = vrot.slane %v862, %v901
    %v903 = vlaneseq
    %v904 = vshrl.u32 %v903, 7
    %v905 = vsub.s32 0, %v904
    %v906 = vrot.slane %v866, %v905
    %v907 = vlaneseq
    %v908 = vshrl.u32 %v907, 7
    %v909 = vsub.s32 0, %v908
    %v910 = vrot.slane %v870, %v909
    %911 = vmatprep.subr.bf16.mxu0 %v323
    %912 = vmatpush1.bf16.msra.mxu0 %v322
    %913 = vmatprep.subr.bf16.mxu0 %v331
    %914 = vmatpush1.bf16.msra.mxu0 %v330
    %915 = vmatprep.subr.bf16.mxu0 %v339
    %916 = vmatpush1.bf16.msra.mxu0 %v338
    %917 = vmatprep.subr.bf16.mxu0 %v347
    %918 = vmatpush1.bf16.msra.mxu0 %v346
    %919 = vmatprep.subr.bf16.mxu0 %v355
    %920 = vmatpush1.bf16.msra.mxu0 %v354
    %921 = vmatprep.subr.bf16.mxu0 %v363
    %922 = vmatpush1.bf16.msra.mxu0 %v362
    %923 = vmatprep.subr.bf16.mxu0 %v371
    %924 = vmatpush1.bf16.msra.mxu0 %v370
    %925 = vmatprep.subr.bf16.mxu0 %v379
    %926 = vmatpush1.bf16.msra.mxu0 %v378
    %927 = vmatprep.subr.bf16.mxu0 %v387
    %928 = vmatpush1.bf16.msra.mxu0 %v386
    %929 = vmatprep.subr.bf16.mxu0 %v395
    %930 = vmatpush1.bf16.msra.mxu0 %v394
    %931 = vmatprep.subr.bf16.mxu0 %v403
    %932 = vmatpush1.bf16.msra.mxu0 %v402
    %933 = vmatprep.subr.bf16.mxu0 %v411
    %934 = vmatpush1.bf16.msra.mxu0 %v410
    %935 = vmatprep.subr.bf16.mxu0 %v419
    %936 = vmatpush1.bf16.msra.mxu0 %v418
    %937 = vmatprep.subr.bf16.mxu0 %v427
    %938 = vmatpush1.bf16.msra.mxu0 %v426
    %939 = vmatprep.subr.bf16.mxu0 %v435
    %940 = vmatpush1.bf16.msra.mxu0 %v434
    %941 = vmatprep.subr.bf16.mxu0 %v443
    %942 = vmatpush1.bf16.msra.mxu0 %v442
    %943 = vmatprep.mubr.bf16.mxu0 %v315
    %944 = vmatmul.mubr.bf16.gmra.mrb[0].mxu0 %v314
    %v945 = vpop.f32.mrb[0].mxu0
    %v946 = vadd.f32 %v882, %v945
    %v947 = vpop.f32.mrb[0].mxu0
    %v948 = vadd.f32 %v886, %v947
    %v949 = vpop.f32.mrb[0].mxu0
    %v950 = vpop.f32.mrb[0].mxu0
    %951 = vdwg.mxu0
    %952 = vmatprep.subr.bf16.mxu0 %v451
    %953 = vmatpush1.bf16.msra.mxu0 %v450
    %954 = vmatprep.subr.bf16.mxu0 %v459
    %955 = vmatpush1.bf16.msra.mxu0 %v458
    %956 = vmatprep.subr.bf16.mxu0 %v467
    %957 = vmatpush1.bf16.msra.mxu0 %v466
    %958 = vmatprep.subr.bf16.mxu0 %v475
    %959 = vmatpush1.bf16.msra.mxu0 %v474
    %960 = vmatprep.subr.bf16.mxu0 %v483
    %961 = vmatpush1.bf16.msra.mxu0 %v482
    %962 = vmatprep.subr.bf16.mxu0 %v491
    %963 = vmatpush1.bf16.msra.mxu0 %v490
    %964 = vmatprep.subr.bf16.mxu0 %v499
    %965 = vmatpush1.bf16.msra.mxu0 %v498
    %966 = vmatprep.subr.bf16.mxu0 %v507
    %967 = vmatpush1.bf16.msra.mxu0 %v506
    %968 = vmatprep.subr.bf16.mxu0 %v515
    %969 = vmatpush1.bf16.msra.mxu0 %v514
    %970 = vmatprep.subr.bf16.mxu0 %v523
    %971 = vmatpush1.bf16.msra.mxu0 %v522
    %972 = vmatprep.subr.bf16.mxu0 %v531
    %973 = vmatpush1.bf16.msra.mxu0 %v530
    %974 = vmatprep.subr.bf16.mxu0 %v539
    %975 = vmatpush1.bf16.msra.mxu0 %v538
    %976 = vmatprep.subr.bf16.mxu0 %v547
    %977 = vmatpush1.bf16.msra.mxu0 %v546
    %978 = vmatprep.subr.bf16.mxu0 %v555
    %979 = vmatpush1.bf16.msra.mxu0 %v554
    %980 = vmatprep.subr.bf16.mxu0 %v563
    %981 = vmatpush1.bf16.msra.mxu0 %v562
    %982 = vmatprep.subr.bf16.mxu0 %v571
    %983 = vmatpush1.bf16.msra.mxu0 %v570
    %984 = vmatprep.mubr.bf16.mxu0 %v317
    %985 = vmatmul.mubr.bf16.gmra.mrb[0].mxu0 %v316
    %v986 = vpop.f32.mrb[0].mxu0
    %v987 = vadd.f32 %v946, %v986
    %v988 = vpop.f32.mrb[0].mxu0
    %v989 = vadd.f32 %v948, %v988
    %v990 = vpop.f32.mrb[0].mxu0
    %v991 = vpop.f32.mrb[0].mxu0
    %992 = vdwg.mxu0
    %993 = vmatprep.subr.bf16.mxu0 %v579
    %994 = vmatpush1.bf16.msra.mxu0 %v578
    %995 = vmatprep.subr.bf16.mxu0 %v587
    %996 = vmatpush1.bf16.msra.mxu0 %v586
    %997 = vmatprep.subr.bf16.mxu0 %v595
    %998 = vmatpush1.bf16.msra.mxu0 %v594
    %999 = vmatprep.subr.bf16.mxu0 %v603
    %1000 = vmatpush1.bf16.msra.mxu0 %v602
    %1001 = vmatprep.subr.bf16.mxu0 %v611
    %1002 = vmatpush1.bf16.msra.mxu0 %v610
    %1003 = vmatprep.subr.bf16.mxu0 %v619
    %1004 = vmatpush1.bf16.msra.mxu0 %v618
    %1005 = vmatprep.subr.bf16.mxu0 %v627
    %1006 = vmatpush1.bf16.msra.mxu0 %v626
    %1007 = vmatprep.subr.bf16.mxu0 %v635
    %1008 = vmatpush1.bf16.msra.mxu0 %v634
    %1009 = vmatprep.subr.bf16.mxu0 %v643
    %1010 = vmatpush1.bf16.msra.mxu0 %v642
    %1011 = vmatprep.subr.bf16.mxu0 %v651
    %1012 = vmatpush1.bf16.msra.mxu0 %v650
    %1013 = vmatprep.subr.bf16.mxu0 %v659
    %1014 = vmatpush1.bf16.msra.mxu0 %v658
    %1015 = vmatprep.subr.bf16.mxu0 %v667
    %1016 = vmatpush1.bf16.msra.mxu0 %v666
    %1017 = vmatprep.subr.bf16.mxu0 %v675
    %1018 = vmatpush1.bf16.msra.mxu0 %v674
    %1019 = vmatprep.subr.bf16.mxu0 %v683
    %1020 = vmatpush1.bf16.msra.mxu0 %v682
    %1021 = vmatprep.subr.bf16.mxu0 %v691
    %1022 = vmatpush1.bf16.msra.mxu0 %v690
    %1023 = vmatprep.subr.bf16.mxu0 %v699
    %1024 = vmatpush1.bf16.msra.mxu0 %v698
    %1025 = vmatprep.mubr.bf16.mxu0 %v319
    %1026 = vmatmul.mubr.bf16.gmra.mrb[0].mxu0 %v318
    %v1027 = vpop.f32.mrb[0].mxu0
    %v1028 = vadd.f32 %v987, %v1027
    %v1029 = vpop.f32.mrb[0].mxu0
    %v1030 = vadd.f32 %v989, %v1029
    %v1031 = vpop.f32.mrb[0].mxu0
    %v1032 = vpop.f32.mrb[0].mxu0
    %1033 = vdwg.mxu0
    %1034 = vmatprep.subr.bf16.mxu0 %v707
    %1035 = vmatpush1.bf16.msra.mxu0 %v706
    %1036 = vmatprep.subr.bf16.mxu0 %v715
    %1037 = vmatpush1.bf16.msra.mxu0 %v714
    %1038 = vmatprep.subr.bf16.mxu0 %v723
    %1039 = vmatpush1.bf16.msra.mxu0 %v722
    %1040 = vmatprep.subr.bf16.mxu0 %v731
    %1041 = vmatpush1.bf16.msra.mxu0 %v730
    %1042 = vmatprep.subr.bf16.mxu0 %v739
    %1043 = vmatpush1.bf16.msra.mxu0 %v738
    %1044 = vmatprep.subr.bf16.mxu0 %v747
    %1045 = vmatpush1.bf16.msra.mxu0 %v746
    %1046 = vmatprep.subr.bf16.mxu0 %v755
    %1047 = vmatpush1.bf16.msra.mxu0 %v754
    %1048 = vmatprep.subr.bf16.mxu0 %v763
    %1049 = vmatpush1.bf16.msra.mxu0 %v762
    %1050 = vmatprep.subr.bf16.mxu0 %v771
    %1051 = vmatpush1.bf16.msra.mxu0 %v770
    %1052 = vmatprep.subr.bf16.mxu0 %v779
    %1053 = vmatpush1.bf16.msra.mxu0 %v778
    %1054 = vmatprep.subr.bf16.mxu0 %v787
    %1055 = vmatpush1.bf16.msra.mxu0 %v786
    %1056 = vmatprep.subr.bf16.mxu0 %v795
    %1057 = vmatpush1.bf16.msra.mxu0 %v794
    %1058 = vmatprep.subr.bf16.mxu0 %v803
    %1059 = vmatpush1.bf16.msra.mxu0 %v802
    %1060 = vmatprep.subr.bf16.mxu0 %v811
    %1061 = vmatpush1.bf16.msra.mxu0 %v810
    %1062 = vmatprep.subr.bf16.mxu0 %v819
    %1063 = vmatpush1.bf16.msra.mxu0 %v818
    %1064 = vmatprep.subr.bf16.mxu0 %v827
    %1065 = vmatpush1.bf16.msra.mxu0 %v826
    %1066 = vmatprep.mubr.bf16.mxu0 %v321
    %1067 = vmatmul.mubr.bf16.gmra.mrb[0].mxu0 %v320
    %v1068 = vpop.f32.mrb[0].mxu0
    %v1069 = vadd.f32 %v1028, %v1068
    %v1070 = vpop.f32.mrb[0].mxu0
    %v1071 = vadd.f32 %v1030, %v1070
    %v1072 = vpop.f32.mrb[0].mxu0
    %v1073 = vpop.f32.mrb[0].mxu0
    %1074 = vdwg.mxu0
    %1075 = vmatprep.subr.bf16.mxu0 %v325
    %1076 = vmatpush1.bf16.msra.mxu0 %v324
    %1077 = vmatprep.subr.bf16.mxu0 %v333
    %1078 = vmatpush1.bf16.msra.mxu0 %v332
    %1079 = vmatprep.subr.bf16.mxu0 %v341
    %1080 = vmatpush1.bf16.msra.mxu0 %v340
    %1081 = vmatprep.subr.bf16.mxu0 %v349
    %1082 = vmatpush1.bf16.msra.mxu0 %v348
    %1083 = vmatprep.subr.bf16.mxu0 %v357
    %1084 = vmatpush1.bf16.msra.mxu0 %v356
    %1085 = vmatprep.subr.bf16.mxu0 %v365
    %1086 = vmatpush1.bf16.msra.mxu0 %v364
    %1087 = vmatprep.subr.bf16.mxu0 %v373
    %1088 = vmatpush1.bf16.msra.mxu0 %v372
    %1089 = vmatprep.subr.bf16.mxu0 %v381
    %1090 = vmatpush1.bf16.msra.mxu0 %v380
    %1091 = vmatprep.subr.bf16.mxu0 %v389
    %1092 = vmatpush1.bf16.msra.mxu0 %v388
    %1093 = vmatprep.subr.bf16.mxu0 %v397
    %1094 = vmatpush1.bf16.msra.mxu0 %v396
    %1095 = vmatprep.subr.bf16.mxu0 %v405
    %1096 = vmatpush1.bf16.msra.mxu0 %v404
    %1097 = vmatprep.subr.bf16.mxu0 %v413
    %1098 = vmatpush1.bf16.msra.mxu0 %v412
    %1099 = vmatprep.subr.bf16.mxu0 %v421
    %1100 = vmatpush1.bf16.msra.mxu0 %v420
    %1101 = vmatprep.subr.bf16.mxu0 %v429
    %1102 = vmatpush1.bf16.msra.mxu0 %v428
    %1103 = vmatprep.subr.bf16.mxu0 %v437
    %1104 = vmatpush1.bf16.msra.mxu0 %v436
    %1105 = vmatprep.subr.bf16.mxu0 %v445
    %1106 = vmatpush1.bf16.msra.mxu0 %v444
    %1107 = vmatprep.mubr.bf16.mxu0 %v315
    %1108 = vmatmul.mubr.bf16.gmra.mrb[0].mxu0 %v314
    %v1109 = vpop.f32.mrb[0].mxu0
    %v1110 = vadd.f32 %v890, %v1109
    %v1111 = vpop.f32.mrb[0].mxu0
    %v1112 = vadd.f32 %v894, %v1111
    %v1113 = vpop.f32.mrb[0].mxu0
    %v1114 = vpop.f32.mrb[0].mxu0
    %1115 = vdwg.mxu0
    %1116 = vmatprep.subr.bf16.mxu0 %v453
    %1117 = vmatpush1.bf16.msra.mxu0 %v452
    %1118 = vmatprep.subr.bf16.mxu0 %v461
    %1119 = vmatpush1.bf16.msra.mxu0 %v460
    %1120 = vmatprep.subr.bf16.mxu0 %v469
    %1121 = vmatpush1.bf16.msra.mxu0 %v468
    %1122 = vmatprep.subr.bf16.mxu0 %v477
    %1123 = vmatpush1.bf16.msra.mxu0 %v476
    %1124 = vmatprep.subr.bf16.mxu0 %v485
    %1125 = vmatpush1.bf16.msra.mxu0 %v484
    %1126 = vmatprep.subr.bf16.mxu0 %v493
    %1127 = vmatpush1.bf16.msra.mxu0 %v492
    %1128 = vmatprep.subr.bf16.mxu0 %v501
    %1129 = vmatpush1.bf16.msra.mxu0 %v500
    %1130 = vmatprep.subr.bf16.mxu0 %v509
    %1131 = vmatpush1.bf16.msra.mxu0 %v508
    %1132 = vmatprep.subr.bf16.mxu0 %v517
    %1133 = vmatpush1.bf16.msra.mxu0 %v516
    %1134 = vmatprep.subr.bf16.mxu0 %v525
    %1135 = vmatpush1.bf16.msra.mxu0 %v524
    %1136 = vmatprep.subr.bf16.mxu0 %v533
    %1137 = vmatpush1.bf16.msra.mxu0 %v532
    %1138 = vmatprep.subr.bf16.mxu0 %v541
    %1139 = vmatpush1.bf16.msra.mxu0 %v540
    %1140 = vmatprep.subr.bf16.mxu0 %v549
    %1141 = vmatpush1.bf16.msra.mxu0 %v548
    %1142 = vmatprep.subr.bf16.mxu0 %v557
    %1143 = vmatpush1.bf16.msra.mxu0 %v556
    %1144 = vmatprep.subr.bf16.mxu0 %v565
    %1145 = vmatpush1.bf16.msra.mxu0 %v564
    %1146 = vmatprep.subr.bf16.mxu0 %v573
    %1147 = vmatpush1.bf16.msra.mxu0 %v572
    %1148 = vmatprep.mubr.bf16.mxu0 %v317
    %1149 = vmatmul.mubr.bf16.gmra.mrb[0].mxu0 %v316
    %v1150 = vpop.f32.mrb[0].mxu0
    %v1151 = vadd.f32 %v1110, %v1150
    %v1152 = vpop.f32.mrb[0].mxu0
    %v1153 = vadd.f32 %v1112, %v1152
    %v1154 = vpop.f32.mrb[0].mxu0
    %v1155 = vpop.f32.mrb[0].mxu0
    %1156 = vdwg.mxu0
    %1157 = vmatprep.subr.bf16.mxu0 %v581
    %1158 = vmatpush1.bf16.msra.mxu0 %v580
    %1159 = vmatprep.subr.bf16.mxu0 %v589
    %1160 = vmatpush1.bf16.msra.mxu0 %v588
    %1161 = vmatprep.subr.bf16.mxu0 %v597
    %1162 = vmatpush1.bf16.msra.mxu0 %v596
    %1163 = vmatprep.subr.bf16.mxu0 %v605
    %1164 = vmatpush1.bf16.msra.mxu0 %v604
    %1165 = vmatprep.subr.bf16.mxu0 %v613
    %1166 = vmatpush1.bf16.msra.mxu0 %v612
    %1167 = vmatprep.subr.bf16.mxu0 %v621
    %1168 = vmatpush1.bf16.msra.mxu0 %v620
    %1169 = vmatprep.subr.bf16.mxu0 %v629
    %1170 = vmatpush1.bf16.msra.mxu0 %v628
    %1171 = vmatprep.subr.bf16.mxu0 %v637
    %1172 = vmatpush1.bf16.msra.mxu0 %v636
    %1173 = vmatprep.subr.bf16.mxu0 %v645
    %1174 = vmatpush1.bf16.msra.mxu0 %v644
    %1175 = vmatprep.subr.bf16.mxu0 %v653
    %1176 = vmatpush1.bf16.msra.mxu0 %v652
    %1177 = vmatprep.subr.bf16.mxu0 %v661
    %1178 = vmatpush1.bf16.msra.mxu0 %v660
    %1179 = vmatprep.subr.bf16.mxu0 %v669
    %1180 = vmatpush1.bf16.msra.mxu0 %v668
    %1181 = vmatprep.subr.bf16.mxu0 %v677
    %1182 = vmatpush1.bf16.msra.mxu0 %v676
    %1183 = vmatprep.subr.bf16.mxu0 %v685
    %1184 = vmatpush1.bf16.msra.mxu0 %v684
    %1185 = vmatprep.subr.bf16.mxu0 %v693
    %1186 = vmatpush1.bf16.msra.mxu0 %v692
    %1187 = vmatprep.subr.bf16.mxu0 %v701
    %1188 = vmatpush1.bf16.msra.mxu0 %v700
    %1189 = vmatprep.mubr.bf16.mxu0 %v319
    %1190 = vmatmul.mubr.bf16.gmra.mrb[0].mxu0 %v318
    %v1191 = vpop.f32.mrb[0].mxu0
    %v1192 = vadd.f32 %v1151, %v1191
    %v1193 = vpop.f32.mrb[0].mxu0
    %v1194 = vadd.f32 %v1153, %v1193
    %v1195 = vpop.f32.mrb[0].mxu0
    %v1196 = vpop.f32.mrb[0].mxu0
    %1197 = vdwg.mxu0
    %1198 = vmatprep.subr.bf16.mxu0 %v709
    %1199 = vmatpush1.bf16.msra.mxu0 %v708
    %1200 = vmatprep.subr.bf16.mxu0 %v717
    %1201 = vmatpush1.bf16.msra.mxu0 %v716
    %1202 = vmatprep.subr.bf16.mxu0 %v725
    %1203 = vmatpush1.bf16.msra.mxu0 %v724
    %1204 = vmatprep.subr.bf16.mxu0 %v733
    %1205 = vmatpush1.bf16.msra.mxu0 %v732
    %1206 = vmatprep.subr.bf16.mxu0 %v741
    %1207 = vmatpush1.bf16.msra.mxu0 %v740
    %1208 = vmatprep.subr.bf16.mxu0 %v749
    %1209 = vmatpush1.bf16.msra.mxu0 %v748
    %1210 = vmatprep.subr.bf16.mxu0 %v757
    %1211 = vmatpush1.bf16.msra.mxu0 %v756
    %1212 = vmatprep.subr.bf16.mxu0 %v765
    %1213 = vmatpush1.bf16.msra.mxu0 %v764
    %1214 = vmatprep.subr.bf16.mxu0 %v773
    %1215 = vmatpush1.bf16.msra.mxu0 %v772
    %1216 = vmatprep.subr.bf16.mxu0 %v781
    %1217 = vmatpush1.bf16.msra.mxu0 %v780
    %1218 = vmatprep.subr.bf16.mxu0 %v789
    %1219 = vmatpush1.bf16.msra.mxu0 %v788
    %1220 = vmatprep.subr.bf16.mxu0 %v797
    %1221 = vmatpush1.bf16.msra.mxu0 %v796
    %1222 = vmatprep.subr.bf16.mxu0 %v805
    %1223 = vmatpush1.bf16.msra.mxu0 %v804
    %1224 = vmatprep.subr.bf16.mxu0 %v813
    %1225 = vmatpush1.bf16.msra.mxu0 %v812
    %1226 = vmatprep.subr.bf16.mxu0 %v821
    %1227 = vmatpush1.bf16.msra.mxu0 %v820
    %1228 = vmatprep.subr.bf16.mxu0 %v829
    %1229 = vmatpush1.bf16.msra.mxu0 %v828
    %1230 = vmatprep.mubr.bf16.mxu0 %v321
    %1231 = vmatmul.mubr.bf16.gmra.mrb[0].mxu0 %v320
    %v1232 = vpop.f32.mrb[0].mxu0
    %v1233 = vadd.f32 %v1192, %v1232
    %v1234 = vpop.f32.mrb[0].mxu0
    %v1235 = vadd.f32 %v1194, %v1234
    %v1236 = vpop.f32.mrb[0].mxu0
    %v1237 = vpop.f32.mrb[0].mxu0
    %1238 = vdwg.mxu0
    %1239 = vmatprep.subr.bf16.mxu0 %v327
    %1240 = vmatpush1.bf16.msra.mxu0 %v326
    %1241 = vmatprep.subr.bf16.mxu0 %v335
    %1242 = vmatpush1.bf16.msra.mxu0 %v334
    %1243 = vmatprep.subr.bf16.mxu0 %v343
    %1244 = vmatpush1.bf16.msra.mxu0 %v342
    %1245 = vmatprep.subr.bf16.mxu0 %v351
    %1246 = vmatpush1.bf16.msra.mxu0 %v350
    %1247 = vmatprep.subr.bf16.mxu0 %v359
    %1248 = vmatpush1.bf16.msra.mxu0 %v358
    %1249 = vmatprep.subr.bf16.mxu0 %v367
    %1250 = vmatpush1.bf16.msra.mxu0 %v366
    %1251 = vmatprep.subr.bf16.mxu0 %v375
    %1252 = vmatpush1.bf16.msra.mxu0 %v374
    %1253 = vmatprep.subr.bf16.mxu0 %v383
    %1254 = vmatpush1.bf16.msra.mxu0 %v382
    %1255 = vmatprep.subr.bf16.mxu0 %v391
    %1256 = vmatpush1.bf16.msra.mxu0 %v390
    %1257 = vmatprep.subr.bf16.mxu0 %v399
    %1258 = vmatpush1.bf16.msra.mxu0 %v398
    %1259 = vmatprep.subr.bf16.mxu0 %v407
    %1260 = vmatpush1.bf16.msra.mxu0 %v406
    %1261 = vmatprep.subr.bf16.mxu0 %v415
    %1262 = vmatpush1.bf16.msra.mxu0 %v414
    %1263 = vmatprep.subr.bf16.mxu0 %v423
    %1264 = vmatpush1.bf16.msra.mxu0 %v422
    %1265 = vmatprep.subr.bf16.mxu0 %v431
    %1266 = vmatpush1.bf16.msra.mxu0 %v430
    %1267 = vmatprep.subr.bf16.mxu0 %v439
    %1268 = vmatpush1.bf16.msra.mxu0 %v438
    %1269 = vmatprep.subr.bf16.mxu0 %v447
    %1270 = vmatpush1.bf16.msra.mxu0 %v446
    %1271 = vmatprep.mubr.bf16.mxu0 %v315
    %1272 = vmatmul.mubr.bf16.gmra.mrb[0].mxu0 %v314
    %v1273 = vpop.f32.mrb[0].mxu0
    %v1274 = vadd.f32 %v898, %v1273
    %v1275 = vpop.f32.mrb[0].mxu0
    %v1276 = vadd.f32 %v902, %v1275
    %v1277 = vpop.f32.mrb[0].mxu0
    %v1278 = vpop.f32.mrb[0].mxu0
    %1279 = vdwg.mxu0
    %1280 = vmatprep.subr.bf16.mxu0 %v455
    %1281 = vmatpush1.bf16.msra.mxu0 %v454
    %1282 = vmatprep.subr.bf16.mxu0 %v463
    %1283 = vmatpush1.bf16.msra.mxu0 %v462
    %1284 = vmatprep.subr.bf16.mxu0 %v471
    %1285 = vmatpush1.bf16.msra.mxu0 %v470
    %1286 = vmatprep.subr.bf16.mxu0 %v479
    %1287 = vmatpush1.bf16.msra.mxu0 %v478
    %1288 = vmatprep.subr.bf16.mxu0 %v487
    %1289 = vmatpush1.bf16.msra.mxu0 %v486
    %1290 = vmatprep.subr.bf16.mxu0 %v495
    %1291 = vmatpush1.bf16.msra.mxu0 %v494
    %1292 = vmatprep.subr.bf16.mxu0 %v503
    %1293 = vmatpush1.bf16.msra.mxu0 %v502
    %1294 = vmatprep.subr.bf16.mxu0 %v511
    %1295 = vmatpush1.bf16.msra.mxu0 %v510
    %1296 = vmatprep.subr.bf16.mxu0 %v519
    %1297 = vmatpush1.bf16.msra.mxu0 %v518
    %1298 = vmatprep.subr.bf16.mxu0 %v527
    %1299 = vmatpush1.bf16.msra.mxu0 %v526
    %1300 = vmatprep.subr.bf16.mxu0 %v535
    %1301 = vmatpush1.bf16.msra.mxu0 %v534
    %1302 = vmatprep.subr.bf16.mxu0 %v543
    %1303 = vmatpush1.bf16.msra.mxu0 %v542
    %1304 = vmatprep.subr.bf16.mxu0 %v551
    %1305 = vmatpush1.bf16.msra.mxu0 %v550
    %1306 = vmatprep.subr.bf16.mxu0 %v559
    %1307 = vmatpush1.bf16.msra.mxu0 %v558
    %1308 = vmatprep.subr.bf16.mxu0 %v567
    %1309 = vmatpush1.bf16.msra.mxu0 %v566
    %1310 = vmatprep.subr.bf16.mxu0 %v575
    %1311 = vmatpush1.bf16.msra.mxu0 %v574
    %1312 = vmatprep.mubr.bf16.mxu0 %v317
    %1313 = vmatmul.mubr.bf16.gmra.mrb[0].mxu0 %v316
    %v1314 = vpop.f32.mrb[0].mxu0
    %v1315 = vadd.f32 %v1274, %v1314
    %v1316 = vpop.f32.mrb[0].mxu0
    %v1317 = vadd.f32 %v1276, %v1316
    %v1318 = vpop.f32.mrb[0].mxu0
    %v1319 = vpop.f32.mrb[0].mxu0
    %1320 = vdwg.mxu0
    %1321 = vmatprep.subr.bf16.mxu0 %v583
    %1322 = vmatpush1.bf16.msra.mxu0 %v582
    %1323 = vmatprep.subr.bf16.mxu0 %v591
    %1324 = vmatpush1.bf16.msra.mxu0 %v590
    %1325 = vmatprep.subr.bf16.mxu0 %v599
    %1326 = vmatpush1.bf16.msra.mxu0 %v598
    %1327 = vmatprep.subr.bf16.mxu0 %v607
    %1328 = vmatpush1.bf16.msra.mxu0 %v606
    %1329 = vmatprep.subr.bf16.mxu0 %v615
    %1330 = vmatpush1.bf16.msra.mxu0 %v614
    %1331 = vmatprep.subr.bf16.mxu0 %v623
    %1332 = vmatpush1.bf16.msra.mxu0 %v622
    %1333 = vmatprep.subr.bf16.mxu0 %v631
    %1334 = vmatpush1.bf16.msra.mxu0 %v630
    %1335 = vmatprep.subr.bf16.mxu0 %v639
    %1336 = vmatpush1.bf16.msra.mxu0 %v638
    %1337 = vmatprep.subr.bf16.mxu0 %v647
    %1338 = vmatpush1.bf16.msra.mxu0 %v646
    %1339 = vmatprep.subr.bf16.mxu0 %v655
    %1340 = vmatpush1.bf16.msra.mxu0 %v654
    %1341 = vmatprep.subr.bf16.mxu0 %v663
    %1342 = vmatpush1.bf16.msra.mxu0 %v662
    %1343 = vmatprep.subr.bf16.mxu0 %v671
    %1344 = vmatpush1.bf16.msra.mxu0 %v670
    %1345 = vmatprep.subr.bf16.mxu0 %v679
    %1346 = vmatpush1.bf16.msra.mxu0 %v678
    %1347 = vmatprep.subr.bf16.mxu0 %v687
    %1348 = vmatpush1.bf16.msra.mxu0 %v686
    %1349 = vmatprep.subr.bf16.mxu0 %v695
    %1350 = vmatpush1.bf16.msra.mxu0 %v694
    %1351 = vmatprep.subr.bf16.mxu0 %v703
    %1352 = vmatpush1.bf16.msra.mxu0 %v702
    %1353 = vmatprep.mubr.bf16.mxu0 %v319
    %1354 = vmatmul.mubr.bf16.gmra.mrb[0].mxu0 %v318
    %v1355 = vpop.f32.mrb[0].mxu0
    %v1356 = vadd.f32 %v1315, %v1355
    %v1357 = vpop.f32.mrb[0].mxu0
    %v1358 = vadd.f32 %v1317, %v1357
    %v1359 = vpop.f32.mrb[0].mxu0
    %v1360 = vpop.f32.mrb[0].mxu0
    %1361 = vdwg.mxu0
    %1362 = vmatprep.subr.bf16.mxu0 %v711
    %1363 = vmatpush1.bf16.msra.mxu0 %v710
    %1364 = vmatprep.subr.bf16.mxu0 %v719
    %1365 = vmatpush1.bf16.msra.mxu0 %v718
    %1366 = vmatprep.subr.bf16.mxu0 %v727
    %1367 = vmatpush1.bf16.msra.mxu0 %v726
    %1368 = vmatprep.subr.bf16.mxu0 %v735
    %1369 = vmatpush1.bf16.msra.mxu0 %v734
    %1370 = vmatprep.subr.bf16.mxu0 %v743
    %1371 = vmatpush1.bf16.msra.mxu0 %v742
    %1372 = vmatprep.subr.bf16.mxu0 %v751
    %1373 = vmatpush1.bf16.msra.mxu0 %v750
    %1374 = vmatprep.subr.bf16.mxu0 %v759
    %1375 = vmatpush1.bf16.msra.mxu0 %v758
    %1376 = vmatprep.subr.bf16.mxu0 %v767
    %1377 = vmatpush1.bf16.msra.mxu0 %v766
    %1378 = vmatprep.subr.bf16.mxu0 %v775
    %1379 = vmatpush1.bf16.msra.mxu0 %v774
    %1380 = vmatprep.subr.bf16.mxu0 %v783
    %1381 = vmatpush1.bf16.msra.mxu0 %v782
    %1382 = vmatprep.subr.bf16.mxu0 %v791
    %1383 = vmatpush1.bf16.msra.mxu0 %v790
    %1384 = vmatprep.subr.bf16.mxu0 %v799
    %1385 = vmatpush1.bf16.msra.mxu0 %v798
    %1386 = vmatprep.subr.bf16.mxu0 %v807
    %1387 = vmatpush1.bf16.msra.mxu0 %v806
    %1388 = vmatprep.subr.bf16.mxu0 %v815
    %1389 = vmatpush1.bf16.msra.mxu0 %v814
    %1390 = vmatprep.subr.bf16.mxu0 %v823
    %1391 = vmatpush1.bf16.msra.mxu0 %v822
    %1392 = vmatprep.subr.bf16.mxu0 %v831
    %1393 = vmatpush1.bf16.msra.mxu0 %v830
    %1394 = vmatprep.mubr.bf16.mxu0 %v321
    %1395 = vmatmul.mubr.bf16.gmra.mrb[0].mxu0 %v320
    %v1396 = vpop.f32.mrb[0].mxu0
    %v1397 = vadd.f32 %v1356, %v1396
    %v1398 = vpop.f32.mrb[0].mxu0
    %v1399 = vadd.f32 %v1358, %v1398
    %v1400 = vpop.f32.mrb[0].mxu0
    %v1401 = vpop.f32.mrb[0].mxu0
    %1402 = vdwg.mxu0
    %1403 = vmatprep.subr.bf16.mxu0 %v329
    %1404 = vmatpush1.bf16.msra.mxu0 %v328
    %1405 = vmatprep.subr.bf16.mxu0 %v337
    %1406 = vmatpush1.bf16.msra.mxu0 %v336
    %1407 = vmatprep.subr.bf16.mxu0 %v345
    %1408 = vmatpush1.bf16.msra.mxu0 %v344
    %1409 = vmatprep.subr.bf16.mxu0 %v353
    %1410 = vmatpush1.bf16.msra.mxu0 %v352
    %1411 = vmatprep.subr.bf16.mxu0 %v361
    %1412 = vmatpush1.bf16.msra.mxu0 %v360
    %1413 = vmatprep.subr.bf16.mxu0 %v369
    %1414 = vmatpush1.bf16.msra.mxu0 %v368
    %1415 = vmatprep.subr.bf16.mxu0 %v377
    %1416 = vmatpush1.bf16.msra.mxu0 %v376
    %1417 = vmatprep.subr.bf16.mxu0 %v385
    %1418 = vmatpush1.bf16.msra.mxu0 %v384
    %1419 = vmatprep.subr.bf16.mxu0 %v393
    %1420 = vmatpush1.bf16.msra.mxu0 %v392
    %1421 = vmatprep.subr.bf16.mxu0 %v401
    %1422 = vmatpush1.bf16.msra.mxu0 %v400
    %1423 = vmatprep.subr.bf16.mxu0 %v409
    %1424 = vmatpush1.bf16.msra.mxu0 %v408
    %1425 = vmatprep.subr.bf16.mxu0 %v417
    %1426 = vmatpush1.bf16.msra.mxu0 %v416
    %1427 = vmatprep.subr.bf16.mxu0 %v425
    %1428 = vmatpush1.bf16.msra.mxu0 %v424
    %1429 = vmatprep.subr.bf16.mxu0 %v433
    %1430 = vmatpush1.bf16.msra.mxu0 %v432
    %1431 = vmatprep.subr.bf16.mxu0 %v441
    %1432 = vmatpush1.bf16.msra.mxu0 %v440
    %1433 = vmatprep.subr.bf16.mxu0 %v449
    %1434 = vmatpush1.bf16.msra.mxu0 %v448
    %1435 = vmatprep.mubr.bf16.mxu0 %v315
    %1436 = vmatmul.mubr.bf16.gmra.mrb[0].mxu0 %v314
    %v1437 = vpop.f32.mrb[0].mxu0
    %v1438 = vadd.f32 %v906, %v1437
    %v1439 = vpop.f32.mrb[0].mxu0
    %v1440 = vadd.f32 %v910, %v1439
    %v1441 = vpop.f32.mrb[0].mxu0
    %v1442 = vpop.f32.mrb[0].mxu0
    %1443 = vdwg.mxu0
    %1444 = vmatprep.subr.bf16.mxu0 %v457
    %1445 = vmatpush1.bf16.msra.mxu0 %v456
    %1446 = vmatprep.subr.bf16.mxu0 %v465
    %1447 = vmatpush1.bf16.msra.mxu0 %v464
    %1448 = vmatprep.subr.bf16.mxu0 %v473
    %1449 = vmatpush1.bf16.msra.mxu0 %v472
    %1450 = vmatprep.subr.bf16.mxu0 %v481
    %1451 = vmatpush1.bf16.msra.mxu0 %v480
    %1452 = vmatprep.subr.bf16.mxu0 %v489
    %1453 = vmatpush1.bf16.msra.mxu0 %v488
    %1454 = vmatprep.subr.bf16.mxu0 %v497
    %1455 = vmatpush1.bf16.msra.mxu0 %v496
    %1456 = vmatprep.subr.bf16.mxu0 %v505
    %1457 = vmatpush1.bf16.msra.mxu0 %v504
    %1458 = vmatprep.subr.bf16.mxu0 %v513
    %1459 = vmatpush1.bf16.msra.mxu0 %v512
    %1460 = vmatprep.subr.bf16.mxu0 %v521
    %1461 = vmatpush1.bf16.msra.mxu0 %v520
    %1462 = vmatprep.subr.bf16.mxu0 %v529
    %1463 = vmatpush1.bf16.msra.mxu0 %v528
    %1464 = vmatprep.subr.bf16.mxu0 %v537
    %1465 = vmatpush1.bf16.msra.mxu0 %v536
    %1466 = vmatprep.subr.bf16.mxu0 %v545
    %1467 = vmatpush1.bf16.msra.mxu0 %v544
    %1468 = vmatprep.subr.bf16.mxu0 %v553
    %1469 = vmatpush1.bf16.msra.mxu0 %v552
    %1470 = vmatprep.subr.bf16.mxu0 %v561
    %1471 = vmatpush1.bf16.msra.mxu0 %v560
    %1472 = vmatprep.subr.bf16.mxu0 %v569
    %1473 = vmatpush1.bf16.msra.mxu0 %v568
    %1474 = vmatprep.subr.bf16.mxu0 %v577
    %1475 = vmatpush1.bf16.msra.mxu0 %v576
    %1476 = vmatprep.mubr.bf16.mxu0 %v317
    %1477 = vmatmul.mubr.bf16.gmra.mrb[0].mxu0 %v316
    %v1478 = vpop.f32.mrb[0].mxu0
    %v1479 = vadd.f32 %v1438, %v1478
    %v1480 = vpop.f32.mrb[0].mxu0
    %v1481 = vadd.f32 %v1440, %v1480
    %v1482 = vpop.f32.mrb[0].mxu0
    %v1483 = vpop.f32.mrb[0].mxu0
    %1484 = vdwg.mxu0
    %1485 = vmatprep.subr.bf16.mxu0 %v585
    %1486 = vmatpush1.bf16.msra.mxu0 %v584
    %1487 = vmatprep.subr.bf16.mxu0 %v593
    %1488 = vmatpush1.bf16.msra.mxu0 %v592
    %1489 = vmatprep.subr.bf16.mxu0 %v601
    %1490 = vmatpush1.bf16.msra.mxu0 %v600
    %1491 = vmatprep.subr.bf16.mxu0 %v609
    %1492 = vmatpush1.bf16.msra.mxu0 %v608
    %1493 = vmatprep.subr.bf16.mxu0 %v617
    %1494 = vmatpush1.bf16.msra.mxu0 %v616
    %1495 = vmatprep.subr.bf16.mxu0 %v625
    %1496 = vmatpush1.bf16.msra.mxu0 %v624
    %1497 = vmatprep.subr.bf16.mxu0 %v633
    %1498 = vmatpush1.bf16.msra.mxu0 %v632
    %1499 = vmatprep.subr.bf16.mxu0 %v641
    %1500 = vmatpush1.bf16.msra.mxu0 %v640
    %1501 = vmatprep.subr.bf16.mxu0 %v649
    %1502 = vmatpush1.bf16.msra.mxu0 %v648
    %1503 = vmatprep.subr.bf16.mxu0 %v657
    %1504 = vmatpush1.bf16.msra.mxu0 %v656
    %1505 = vmatprep.subr.bf16.mxu0 %v665
    %1506 = vmatpush1.bf16.msra.mxu0 %v664
    %1507 = vmatprep.subr.bf16.mxu0 %v673
    %1508 = vmatpush1.bf16.msra.mxu0 %v672
    %1509 = vmatprep.subr.bf16.mxu0 %v681
    %1510 = vmatpush1.bf16.msra.mxu0 %v680
    %1511 = vmatprep.subr.bf16.mxu0 %v689
    %1512 = vmatpush1.bf16.msra.mxu0 %v688
    %1513 = vmatprep.subr.bf16.mxu0 %v697
    %1514 = vmatpush1.bf16.msra.mxu0 %v696
    %1515 = vmatprep.subr.bf16.mxu0 %v705
    %1516 = vmatpush1.bf16.msra.mxu0 %v704
    %1517 = vmatprep.mubr.bf16.mxu0 %v319
    %1518 = vmatmul.mubr.bf16.gmra.mrb[0].mxu0 %v318
    %v1519 = vpop.f32.mrb[0].mxu0
    %v1520 = vadd.f32 %v1479, %v1519
    %v1521 = vpop.f32.mrb[0].mxu0
    %v1522 = vadd.f32 %v1481, %v1521
    %v1523 = vpop.f32.mrb[0].mxu0
    %v1524 = vpop.f32.mrb[0].mxu0
    %1525 = vdwg.mxu0
    %1526 = vmatprep.subr.bf16.mxu0 %v713
    %1527 = vmatpush1.bf16.msra.mxu0 %v712
    %1528 = vmatprep.subr.bf16.mxu0 %v721
    %1529 = vmatpush1.bf16.msra.mxu0 %v720
    %1530 = vmatprep.subr.bf16.mxu0 %v729
    %1531 = vmatpush1.bf16.msra.mxu0 %v728
    %1532 = vmatprep.subr.bf16.mxu0 %v737
    %1533 = vmatpush1.bf16.msra.mxu0 %v736
    %1534 = vmatprep.subr.bf16.mxu0 %v745
    %1535 = vmatpush1.bf16.msra.mxu0 %v744
    %1536 = vmatprep.subr.bf16.mxu0 %v753
    %1537 = vmatpush1.bf16.msra.mxu0 %v752
    %1538 = vmatprep.subr.bf16.mxu0 %v761
    %1539 = vmatpush1.bf16.msra.mxu0 %v760
    %1540 = vmatprep.subr.bf16.mxu0 %v769
    %1541 = vmatpush1.bf16.msra.mxu0 %v768
    %1542 = vmatprep.subr.bf16.mxu0 %v777
    %1543 = vmatpush1.bf16.msra.mxu0 %v776
    %1544 = vmatprep.subr.bf16.mxu0 %v785
    %1545 = vmatpush1.bf16.msra.mxu0 %v784
    %1546 = vmatprep.subr.bf16.mxu0 %v793
    %1547 = vmatpush1.bf16.msra.mxu0 %v792
    %1548 = vmatprep.subr.bf16.mxu0 %v801
    %1549 = vmatpush1.bf16.msra.mxu0 %v800
    %1550 = vmatprep.subr.bf16.mxu0 %v809
    %1551 = vmatpush1.bf16.msra.mxu0 %v808
    %1552 = vmatprep.subr.bf16.mxu0 %v817
    %1553 = vmatpush1.bf16.msra.mxu0 %v816
    %1554 = vmatprep.subr.bf16.mxu0 %v825
    %1555 = vmatpush1.bf16.msra.mxu0 %v824
    %1556 = vmatprep.subr.bf16.mxu0 %v833
    %1557 = vmatpush1.bf16.msra.mxu0 %v832
    %1558 = vmatprep.mubr.bf16.mxu0 %v321
    %1559 = vmatmul.mubr.bf16.gmra.mrb[0].mxu0 %v320
    %v1560 = vpop.f32.mrb[0].mxu0
    %v1561 = vadd.f32 %v1520, %v1560
    %v1562 = vpop.f32.mrb[0].mxu0
    %v1563 = vadd.f32 %v1522, %v1562
    %v1564 = vpop.f32.mrb[0].mxu0
    %v1565 = vpop.f32.mrb[0].mxu0
    %1566 = vdwg.mxu0
    %v1567 = vtanh.pop %v1069
    %v1568 = vtanh.pop %v1071
    %v1569 = vtanh.pop %v1233
    %v1570 = vtanh.pop %v1235
    %v1571 = vtanh.pop %v1397
    %v1572 = vtanh.pop %v1399
    %v1573 = vtanh.pop %v1561
    %v1574 = vtanh.pop %v1563
    %v1575 = vpack.c.bf16 %v1567, %v1567
    %v1576 = vpack.c.bf16 %v1568, %v1568
    %v1577 = vpack.c.bf16 %v1569, %v1569
    %v1578 = vpack.c.bf16 %v1570, %v1570
    %v1579 = vpack.c.bf16 %v1571, %v1571
    %v1580 = vpack.c.bf16 %v1572, %v1572
    %v1581 = vpack.c.bf16 %v1573, %v1573
    %v1582 = vpack.c.bf16 %v1574, %v1574
    %v1583 = vld [vmem:[#allocation3] sm:$0xff]
    %v1584 = vld [vmem:[#allocation3 + $0x8] sm:$0xff]
    %v1585 = vld [vmem:[#allocation3 + $0x10] sm:$0xff]
    %v1586 = vld [vmem:[#allocation3 + $0x18] sm:$0xff]
    %v1587 = vld [vmem:[#allocation3 + $0x20] sm:$0xff]
    %v1588 = vld [vmem:[#allocation3 + $0x28] sm:$0xff]
    %v1589 = vld [vmem:[#allocation3 + $0x30] sm:$0xff]
    %v1590 = vld [vmem:[#allocation3 + $0x38] sm:$0xff]
    %v1591 = vld [vmem:[#allocation3 + $0x40] sm:$0xff]
    %v1592 = vld [vmem:[#allocation3 + $0x48] sm:$0xff]
    %v1593 = vld [vmem:[#allocation3 + $0x50] sm:$0xff]
    %v1594 = vld [vmem:[#allocation3 + $0x58] sm:$0xff]
    %v1595 = vld [vmem:[#allocation3 + $0x60] sm:$0xff]
    %v1596 = vld [vmem:[#allocation3 + $0x68] sm:$0xff]
    %v1597 = vld [vmem:[#allocation3 + $0x70] sm:$0xff]
    %v1598 = vld [vmem:[#allocation3 + $0x78] sm:$0xff]
    %v1599 = vld [vmem:[#allocation3 + $0x80] sm:$0xff]
    %v1600 = vld [vmem:[#allocation3 + $0x88] sm:$0xff]
    %v1601 = vld [vmem:[#allocation3 + $0x90] sm:$0xff]
    %v1602 = vld [vmem:[#allocation3 + $0x98] sm:$0xff]
    %v1603 = vld [vmem:[#allocation3 + $0xa0] sm:$0xff]
    %v1604 = vld [vmem:[#allocation3 + $0xa8] sm:$0xff]
    %v1605 = vld [vmem:[#allocation3 + $0xb0] sm:$0xff]
    %v1606 = vld [vmem:[#allocation3 + $0xb8] sm:$0xff]
    %v1607 = vld [vmem:[#allocation3 + $0xc0] sm:$0xff]
    %v1608 = vld [vmem:[#allocation3 + $0xc8] sm:$0xff]
    %v1609 = vld [vmem:[#allocation3 + $0xd0] sm:$0xff]
    %v1610 = vld [vmem:[#allocation3 + $0xd8] sm:$0xff]
    %v1611 = vld [vmem:[#allocation3 + $0xe0] sm:$0xff]
    %v1612 = vld [vmem:[#allocation3 + $0xe8] sm:$0xff]
    %v1613 = vld [vmem:[#allocation3 + $0xf0] sm:$0xff]
    %v1614 = vld [vmem:[#allocation3 + $0xf8] sm:$0xff]
    %v1615 = vld [vmem:[#allocation3 + $0x100] sm:$0xff]
    %v1616 = vld [vmem:[#allocation3 + $0x108] sm:$0xff]
    %v1617 = vld [vmem:[#allocation3 + $0x110] sm:$0xff]
    %v1618 = vld [vmem:[#allocation3 + $0x118] sm:$0xff]
    %v1619 = vld [vmem:[#allocation3 + $0x120] sm:$0xff]
    %v1620 = vld [vmem:[#allocation3 + $0x128] sm:$0xff]
    %v1621 = vld [vmem:[#allocation3 + $0x130] sm:$0xff]
    %v1622 = vld [vmem:[#allocation3 + $0x138] sm:$0xff]
    %v1623 = vld [vmem:[#allocation3 + $0x140] sm:$0xff]
    %v1624 = vld [vmem:[#allocation3 + $0x148] sm:$0xff]
    %v1625 = vld [vmem:[#allocation3 + $0x150] sm:$0xff]
    %v1626 = vld [vmem:[#allocation3 + $0x158] sm:$0xff]
    %v1627 = vld [vmem:[#allocation3 + $0x160] sm:$0xff]
    %v1628 = vld [vmem:[#allocation3 + $0x168] sm:$0xff]
    %v1629 = vld [vmem:[#allocation3 + $0x170] sm:$0xff]
    %v1630 = vld [vmem:[#allocation3 + $0x178] sm:$0xff]
    %v1631 = vld [vmem:[#allocation3 + $0x180] sm:$0xff]
    %v1632 = vld [vmem:[#allocation3 + $0x188] sm:$0xff]
    %v1633 = vld [vmem:[#allocation3 + $0x190] sm:$0xff]
    %v1634 = vld [vmem:[#allocation3 + $0x198] sm:$0xff]
    %v1635 = vld [vmem:[#allocation3 + $0x1a0] sm:$0xff]
    %v1636 = vld [vmem:[#allocation3 + $0x1a8] sm:$0xff]
    %v1637 = vld [vmem:[#allocation3 + $0x1b0] sm:$0xff]
    %v1638 = vld [vmem:[#allocation3 + $0x1b8] sm:$0xff]
    %v1639 = vld [vmem:[#allocation3 + $0x1c0] sm:$0xff]
    %v1640 = vld [vmem:[#allocation3 + $0x1c8] sm:$0xff]
    %v1641 = vld [vmem:[#allocation3 + $0x1d0] sm:$0xff]
    %v1642 = vld [vmem:[#allocation3 + $0x1d8] sm:$0xff]
    %v1643 = vld [vmem:[#allocation3 + $0x1e0] sm:$0xff]
    %v1644 = vld [vmem:[#allocation3 + $0x1e8] sm:$0xff]
    %v1645 = vld [vmem:[#allocation3 + $0x1f0] sm:$0xff]
    %v1646 = vld [vmem:[#allocation3 + $0x1f8] sm:$0xff]
    %v1647 = vld [vmem:[#allocation11] sm:$0x1]
    %v1648 = vunpack.c.l.bf16 %v1647
    %v1649 = vlaneseq
    %v1650 = vshrl.u32 %v1649, 7
    %v1651 = vsub.s32 0, %v1650
    %v1652 = vrot.slane %v1648, %v1651
    %1653 = vmatprep.subr.bf16.mxu0 0
    %1654 = vmatpush1.bf16.msra.mxu0 %v1583
    %1655 = vmatprep.subr.bf16.mxu0 0
    %1656 = vmatpush1.bf16.msra.mxu0 %v1584
    %1657 = vmatprep.subr.bf16.mxu0 0
    %1658 = vmatpush1.bf16.msra.mxu0 %v1585
    %1659 = vmatprep.subr.bf16.mxu0 0
    %1660 = vmatpush1.bf16.msra.mxu0 %v1586
    %1661 = vmatprep.subr.bf16.mxu0 0
    %1662 = vmatpush1.bf16.msra.mxu0 %v1587
    %1663 = vmatprep.subr.bf16.mxu0 0
    %1664 = vmatpush1.bf16.msra.mxu0 %v1588
    %1665 = vmatprep.subr.bf16.mxu0 0
    %1666 = vmatpush1.bf16.msra.mxu0 %v1589
    %1667 = vmatprep.subr.bf16.mxu0 0
    %1668 = vmatpush1.bf16.msra.mxu0 %v1590
    %1669 = vmatprep.subr.bf16.mxu0 0
    %1670 = vmatpush1.bf16.msra.mxu0 %v1591
    %1671 = vmatprep.subr.bf16.mxu0 0
    %1672 = vmatpush1.bf16.msra.mxu0 %v1592
    %1673 = vmatprep.subr.bf16.mxu0 0
    %1674 = vmatpush1.bf16.msra.mxu0 %v1593
    %1675 = vmatprep.subr.bf16.mxu0 0
    %1676 = vmatpush1.bf16.msra.mxu0 %v1594
    %1677 = vmatprep.subr.bf16.mxu0 0
    %1678 = vmatpush1.bf16.msra.mxu0 %v1595
    %1679 = vmatprep.subr.bf16.mxu0 0
    %1680 = vmatpush1.bf16.msra.mxu0 %v1596
    %1681 = vmatprep.subr.bf16.mxu0 0
    %1682 = vmatpush1.bf16.msra.mxu0 %v1597
    %1683 = vmatprep.subr.bf16.mxu0 0
    %1684 = vmatpush1.bf16.msra.mxu0 %v1598
    %1685 = vmatprep.mubr.bf16.mxu0 %v1576
    %1686 = vmatmul.mubr.bf16.gmra.mrb[0].mxu0 %v1575
    %v1687 = vpop.f32.mrb[0].mxu0
    %v1688 = vadd.f32 %v1652, %v1687
    %v1689 = vpop.f32.mrb[0].mxu0
    %v1690 = vpop.f32.mrb[0].mxu0
    %v1691 = vpop.f32.mrb[0].mxu0
    %1692 = vdwg.mxu0
    %1693 = vmatprep.subr.bf16.mxu0 0
    %1694 = vmatpush1.bf16.msra.mxu0 %v1599
    %1695 = vmatprep.subr.bf16.mxu0 0
    %1696 = vmatpush1.bf16.msra.mxu0 %v1600
    %1697 = vmatprep.subr.bf16.mxu0 0
    %1698 = vmatpush1.bf16.msra.mxu0 %v1601
    %1699 = vmatprep.subr.bf16.mxu0 0
    %1700 = vmatpush1.bf16.msra.mxu0 %v1602
    %1701 = vmatprep.subr.bf16.mxu0 0
    %1702 = vmatpush1.bf16.msra.mxu0 %v1603
    %1703 = vmatprep.subr.bf16.mxu0 0
    %1704 = vmatpush1.bf16.msra.mxu0 %v1604
    %1705 = vmatprep.subr.bf16.mxu0 0
    %1706 = vmatpush1.bf16.msra.mxu0 %v1605
    %1707 = vmatprep.subr.bf16.mxu0 0
    %1708 = vmatpush1.bf16.msra.mxu0 %v1606
    %1709 = vmatprep.subr.bf16.mxu0 0
    %1710 = vmatpush1.bf16.msra.mxu0 %v1607
    %1711 = vmatprep.subr.bf16.mxu0 0
    %1712 = vmatpush1.bf16.msra.mxu0 %v1608
    %1713 = vmatprep.subr.bf16.mxu0 0
    %1714 = vmatpush1.bf16.msra.mxu0 %v1609
    %1715 = vmatprep.subr.bf16.mxu0 0
    %1716 = vmatpush1.bf16.msra.mxu0 %v1610
    %1717 = vmatprep.subr.bf16.mxu0 0
    %1718 = vmatpush1.bf16.msra.mxu0 %v1611
    %1719 = vmatprep.subr.bf16.mxu0 0
    %1720 = vmatpush1.bf16.msra.mxu0 %v1612
    %1721 = vmatprep.subr.bf16.mxu0 0
    %1722 = vmatpush1.bf16.msra.mxu0 %v1613
    %1723 = vmatprep.subr.bf16.mxu0 0
    %1724 = vmatpush1.bf16.msra.mxu0 %v1614
    %1725 = vmatprep.mubr.bf16.mxu0 %v1578
    %1726 = vmatmul.mubr.bf16.gmra.mrb[0].mxu0 %v1577
    %v1727 = vpop.f32.mrb[0].mxu0
    %v1728 = vadd.f32 %v1688, %v1727
    %v1729 = vpop.f32.mrb[0].mxu0
    %v1730 = vpop.f32.mrb[0].mxu0
    %v1731 = vpop.f32.mrb[0].mxu0
    %1732 = vdwg.mxu0
    %1733 = vmatprep.subr.bf16.mxu0 0
    %1734 = vmatpush1.bf16.msra.mxu0 %v1615
    %1735 = vmatprep.subr.bf16.mxu0 0
    %1736 = vmatpush1.bf16.msra.mxu0 %v1616
    %1737 = vmatprep.subr.bf16.mxu0 0
    %1738 = vmatpush1.bf16.msra.mxu0 %v1617
    %1739 = vmatprep.subr.bf16.mxu0 0
    %1740 = vmatpush1.bf16.msra.mxu0 %v1618
    %1741 = vmatprep.subr.bf16.mxu0 0
    %1742 = vmatpush1.bf16.msra.mxu0 %v1619
    %1743 = vmatprep.subr.bf16.mxu0 0
    %1744 = vmatpush1.bf16.msra.mxu0 %v1620
    %1745 = vmatprep.subr.bf16.mxu0 0
    %1746 = vmatpush1.bf16.msra.mxu0 %v1621
    %1747 = vmatprep.subr.bf16.mxu0 0
    %1748 = vmatpush1.bf16.msra.mxu0 %v1622
    %1749 = vmatprep.subr.bf16.mxu0 0
    %1750 = vmatpush1.bf16.msra.mxu0 %v1623
    %1751 = vmatprep.subr.bf16.mxu0 0
    %1752 = vmatpush1.bf16.msra.mxu0 %v1624
    %1753 = vmatprep.subr.bf16.mxu0 0
    %1754 = vmatpush1.bf16.msra.mxu0 %v1625
    %1755 = vmatprep.subr.bf16.mxu0 0
    %1756 = vmatpush1.bf16.msra.mxu0 %v1626
    %1757 = vmatprep.subr.bf16.mxu0 0
    %1758 = vmatpush1.bf16.msra.mxu0 %v1627
    %1759 = vmatprep.subr.bf16.mxu0 0
    %1760 = vmatpush1.bf16.msra.mxu0 %v1628
    %1761 = vmatprep.subr.bf16.mxu0 0
    %1762 = vmatpush1.bf16.msra.mxu0 %v1629
    %1763 = vmatprep.subr.bf16.mxu0 0
    %1764 = vmatpush1.bf16.msra.mxu0 %v1630
    %1765 = vmatprep.mubr.bf16.mxu0 %v1580
    %1766 = vmatmul.mubr.bf16.gmra.mrb[0].mxu0 %v1579
    %v1767 = vpop.f32.mrb[0].mxu0
    %v1768 = vadd.f32 %v1728, %v1767
    %v1769 = vpop.f32.mrb[0].mxu0
    %v1770 = vpop.f32.mrb[0].mxu0
    %v1771 = vpop.f32.mrb[0].mxu0
    %1772 = vdwg.mxu0
    %1773 = vmatprep.subr.bf16.mxu0 0
    %1774 = vmatpush1.bf16.msra.mxu0 %v1631
    %1775 = vmatprep.subr.bf16.mxu0 0
    %1776 = vmatpush1.bf16.msra.mxu0 %v1632
    %1777 = vmatprep.subr.bf16.mxu0 0
    %1778 = vmatpush1.bf16.msra.mxu0 %v1633
    %1779 = vmatprep.subr.bf16.mxu0 0
    %1780 = vmatpush1.bf16.msra.mxu0 %v1634
    %1781 = vmatprep.subr.bf16.mxu0 0
    %1782 = vmatpush1.bf16.msra.mxu0 %v1635
    %1783 = vmatprep.subr.bf16.mxu0 0
    %1784 = vmatpush1.bf16.msra.mxu0 %v1636
    %1785 = vmatprep.subr.bf16.mxu0 0
    %1786 = vmatpush1.bf16.msra.mxu0 %v1637
    %1787 = vmatprep.subr.bf16.mxu0 0
    %1788 = vmatpush1.bf16.msra.mxu0 %v1638
    %1789 = vmatprep.subr.bf16.mxu0 0
    %1790 = vmatpush1.bf16.msra.mxu0 %v1639
    %1791 = vmatprep.subr.bf16.mxu0 0
    %1792 = vmatpush1.bf16.msra.mxu0 %v1640
    %1793 = vmatprep.subr.bf16.mxu0 0
    %1794 = vmatpush1.bf16.msra.mxu0 %v1641
    %1795 = vmatprep.subr.bf16.mxu0 0
    %1796 = vmatpush1.bf16.msra.mxu0 %v1642
    %1797 = vmatprep.subr.bf16.mxu0 0
    %1798 = vmatpush1.bf16.msra.mxu0 %v1643
    %1799 = vmatprep.subr.bf16.mxu0 0
    %1800 = vmatpush1.bf16.msra.mxu0 %v1644
    %1801 = vmatprep.subr.bf16.mxu0 0
    %1802 = vmatpush1.bf16.msra.mxu0 %v1645
    %1803 = vmatprep.subr.bf16.mxu0 0
    %1804 = vmatpush1.bf16.msra.mxu0 %v1646
    %1805 = vmatprep.mubr.bf16.mxu0 %v1582
    %1806 = vmatmul.mubr.bf16.gmra.mrb[0].mxu0 %v1581
    %v1807 = vpop.f32.mrb[0].mxu0
    %v1808 = vadd.f32 %v1768, %v1807
    %v1809 = vpop.f32.mrb[0].mxu0
    %v1810 = vpop.f32.mrb[0].mxu0
    %v1811 = vpop.f32.mrb[0].mxu0
    %1812 = vdwg.mxu0
    %vm1813 = vcmask 146432
    %1814 = vst.msk [vmem:[%s6] sm:$0xff] %vm1813, %v1808
    // Predicated region
    $region60: #{meta_model_forward.1} parent=1 // pred_check
      _
    $region61: #{meta_model_forward.1} parent=1 // pred_check_branch
      %1816 = sbr.rel (0) target = $region63
    $region62: #{meta_model_forward.1} parent=1 // pred_region
      _
    $region63: #{meta_model_forward.1} parent=1 // pred_fallthru
      _
    // Predicated region
    $region64: #{meta_model_forward.1} parent=1 // pred_check
      _
    $region65: #{meta_model_forward.1} parent=1 // pred_check_branch
      %1818 = sbr.rel (0) target = $region67
    $region66: #{meta_model_forward.1} parent=1 // pred_region
      _
    $region67: #{meta_model_forward.1} parent=1 // pred_fallthru
      _
    %1819 = vsyncpa [#allocation8], 1
    %1820 = vsyncpa [#allocation12], 1
    %1821 = vsyncpa [#allocation9], 1
  %1822 = vsyncmov [#allocation5]
  %s1823 = vpop.sfrf %1822
  %p1824 = scmp.eq.s32.totalorder %s1823, 0
  %p1825 = pneg %p1824
  %1827 = shalt.err (%p1825)
  %s1828 = scalar_lea.sflag [#allocation5], 1
  %1829 = vsyncmov %s1828
  %s1830 = vpop.sfrf %1829
  %p1831 = scmp.eq.s32.totalorder %s1830, 0
  %p1832 = pneg %p1831
  %1834 = shalt.err (%p1832)
  %1835 = vsyncmov [#allocation6]
  %s1836 = vpop.sfrf %1835
  %p1837 = scmp.eq.s32.totalorder %s1836, 0
  %p1838 = pneg %p1837
  %1840 = shalt.err (%p1838)
  %s1841 = scalar_lea.sflag [#allocation6], 1
  %1842 = vsyncmov %s1841
  %s1843 = vpop.sfrf %1842
  %p1844 = scmp.eq.s32.totalorder %s1843, 0
  %p1845 = pneg %p1844
  %1847 = shalt.err (%p1845)

</llo_original>
